<compile_context>
chip_gen: v7x
topology: tpu7x:2x2x1
jax: 0.10.0
libtpu: 0.0.40
codegen_flags: <defaults>
</compile_context>

<pallas_src>
from functools import partial

import jax
import jax.numpy as jnp
from jax.experimental import pallas as pl
from jax.experimental.pallas import tpu as pltpu


def _sigmoid_mul_kernel(gate_ref, x_ref, out_ref, *, tile_c: int):
    # gate_ref: (NC, 1) fully resident in VMEM; x_ref / out_ref: (tile_c, HW) tile.
    row = pl.multiple_of(pl.program_id(0) * tile_c, tile_c)
    g = jax.nn.sigmoid(gate_ref[pl.ds(row, tile_c), :].astype(jnp.float32))  # EUP path
    x = x_ref[...]
    out_ref[...] = (x * g.astype(x.dtype)).astype(out_ref.dtype)


def _pick_tile_c(nc: int, hw: int, itemsize: int) -> int:
    """Pick the channel tile: (a) divides NC, (b) sublane-packed for the dtype,
    (c) block stays ~<=2 MiB in VMEM (safe on v5e 16 MiB scoped default and
    v7x 64 MiB physical with double buffering), (d) >=2 grid steps if possible."""
    sub = 8 * max(1, 4 // itemsize)              # 8 rows (f32) / 16 (bf16) / 32 (int8)
    hw_pad = pl.cdiv(hw, 128) * 128              # lane padding inside VMEM
    target_bytes = 2 * 1024 * 1024               # ~2 MiB per stream block
    max_rows = max(sub, target_bytes // max(1, hw_pad * itemsize))
    cap = nc // 2 if nc >= 2 * sub else nc       # keep >=2 steps for v7x's 2 TCs
    limit = min(max_rows, cap, nc)
    best = None
    t = sub
    while t <= limit:
        if nc % t == 0:
            best = t
        t += sub
    return best if best is not None else nc      # fallback: single full-extent block


def sigmoid_mul(x_nchw: jax.Array, gate_nc11: jax.Array) -> jax.Array:
    """out[n,c,h,w] = x[n,c,h,w] * sigmoid(gate[n,c,0,0])"""
    N, C, H, W = x_nchw.shape
    assert gate_nc11.shape == (N, C, 1, 1)
    HW = H * W
    NC = N * C
    itemsize = jnp.dtype(x_nchw.dtype).itemsize

    tile_c = _pick_tile_c(NC, HW, itemsize)
    grid = (NC // tile_c,)

    x2d = x_nchw.reshape(NC, HW)
    g2d = gate_nc11.reshape(NC, 1)

    kernel = partial(_sigmoid_mul_kernel, tile_c=tile_c)

    # Note: HW=196 is not a multiple of 128 -> trailing lanes use masked stores.
    # This is a VMEM-store-slot cost only; the HBM DMAs (the binding resource)
    # stay fully contiguous, so we avoid an extra wrapper-side pad/copy pass.
    out2d = pl.pallas_call(
        kernel,
        out_shape=jax.ShapeDtypeStruct((NC, HW), x_nchw.dtype),
        grid_spec=pltpu.PrefetchScalarGridSpec(
            num_scalar_prefetch=0,
            grid=grid,
            in_specs=[
                # gate: constant block index -> DMA'd once, stays resident in VMEM
                pl.BlockSpec((NC, 1), lambda i: (0, 0)),
                # x: large channel tile, full spatial extent as the lane dim
                pl.BlockSpec((tile_c, HW), lambda i: (i, 0)),
            ],
            out_specs=pl.BlockSpec((tile_c, HW), lambda i: (i, 0)),
        ),
        compiler_params=pltpu.CompilerParams(
            dimension_semantics=("parallel",),
            vmem_limit_bytes=48 * 1024 * 1024,
        ),
        cost_estimate=pl.CostEstimate(
            flops=2 * NC * HW,                       # broadcast multiply
            transcendentals=NC,                      # one sigmoid per channel
            bytes_accessed=(2 * NC * HW + NC) * itemsize,
        ),
    )(g2d, x2d)

    return out2d.reshape(N, C, H, W)


if __name__ == "__main__":
    # Shapes from the PyTorch module: x461 (1, 1344, 14, 14), x465 (1, 1344, 1, 1).
    N, C, H, W = 1, 1344, 14, 14

    key = jax.random.PRNGKey(0)
    kx, kg = jax.random.split(key)
    x461 = jax.random.normal(kx, (N, C, H, W), dtype=jnp.float32)
    x465 = jax.random.normal(kg, (N, C, 1, 1), dtype=jnp.float32)

    out = sigmoid_mul(x461, x465)
    out = jax.block_until_ready(out)

    # Reference check (plain JAX, matches x461 * x465.sigmoid())
    ref = x461 * jax.nn.sigmoid(x465)
    assert out.shape == (N, C, H, W)
    assert jnp.allclose(out, ref, atol=1e-6, rtol=1e-6)

    print("KERNEL_OK")
</pallas_src>

<mosaic_0001>
module attributes {stable_mosaic.version = 11 : i64} {
  func.func @_sigmoid_mul_kernel(%arg0: i32, %arg1: memref<1344x1xf32, #tpu.memory_space<vmem>>, %arg2: memref<672x196xf32, #tpu.memory_space<vmem>>, %arg3: memref<672x196xf32, #tpu.memory_space<vmem>>) attributes {dimension_semantics = [#tpu.dimension_semantics<parallel>], iteration_bounds = array<i64: 2>, scalar_prefetch = 0 : i64, scratch_operands = 0 : i64, tpu.core_type = #tpu.core_type<tc>, window_params = [{pipeline_mode = #tpu.pipeline_mode<synchronous>, transform_indices = @transform_0, window_bounds = array<i64: 1344, 1>}, {transform_indices = @transform_1, window_bounds = array<i64: 672, 196>}, {transform_indices = @transform_2, window_bounds = array<i64: 672, 196>}]} {
    %c672_i32 = arith.constant 672 : i32
    %0 = arith.muli %arg0, %c672_i32 : i32
    %1 = tpu.assume_multiple %0, 672 : i32
    %2 = arith.index_cast %1 : i32 to index
    %c0 = arith.constant 0 : index
    %3 = vector.load %arg1[%2, %c0] : memref<1344x1xf32, #tpu.memory_space<vmem>>, vector<672x1xf32>
    %4 = arith.negf %3 : vector<672x1xf32>
    %5 = math.exp %4 : vector<672x1xf32>
    %cst = arith.constant 1.000000e+00 : f32
    %6 = vector.broadcast %cst : f32 to vector<672x1xf32>
    %7 = arith.addf %6, %5 : vector<672x1xf32>
    %8 = arith.divf %6, %7 : vector<672x1xf32>
    %c0_0 = arith.constant 0 : index
    %c0_1 = arith.constant 0 : index
    %9 = vector.load %arg2[%c0_0, %c0_1] : memref<672x196xf32, #tpu.memory_space<vmem>>, vector<672x196xf32>
    %10 = vector.broadcast %8 : vector<672x1xf32> to vector<672x196xf32>
    %11 = arith.mulf %9, %10 : vector<672x196xf32>
    %c0_2 = arith.constant 0 : index
    %c0_3 = arith.constant 0 : index
    %12 = vector.load %arg3[%c0_2, %c0_3] : memref<672x196xf32, #tpu.memory_space<vmem>>, vector<672x196xf32>
    tpu.vector_store %arg3[%c0_2, %c0_3], %11 {strides = array<i32>} : memref<672x196xf32, #tpu.memory_space<vmem>>, vector<672x196xf32>,
    return
  }
  func.func @transform_0(%arg0: i32) -> (i32, i32) {
    %c0_i32 = arith.constant 0 : i32
    %c0_i32_0 = arith.constant 0 : i32
    %c0_i32_1 = arith.constant 0 : i32
    return %c0_i32, %c0_i32_0 : i32, i32
  }
  func.func @transform_1(%arg0: i32) -> (i32, i32) {
    %c0_i32 = arith.constant 0 : i32
    %c0_i32_0 = arith.constant 0 : i32
    return %arg0, %c0_i32 : i32, i32
  }
  func.func @transform_2(%arg0: i32) -> (i32, i32) {
    %c0_i32 = arith.constant 0 : i32
    %c0_i32_0 = arith.constant 0 : i32
    return %arg0, %c0_i32 : i32, i32
  }
}

</mosaic_0001>

<llo_original>
// kernel: tpu_custom_call.1
$region0: #{tpu_custom_call.1}
  #allocation0 [shape = 'u32[]', space=smem, size = 0x4, offset = 0x4, fixed_abs, tag = 'smem constant byte address 0x4 - core index']
  #allocation1 [shape = 'u32[144,128]{1,0:T(1,128)}', space=vmem, size = 0x12000, scoped, tag = 'internal scratch']
  %s0 = inlined_call_operand.vmem [shape: f32[1344,1], index: 0, kind: input, shape index: {}]
  %s1 = inlined_call_operand.vmem [shape: f32[1344,196], index: 1, kind: input, shape index: {}]
  %s2 = inlined_call_operand.vmem [shape: f32[1344,196], index: 2, kind: output, shape index: {}]
  %s3 = sld [smem:[#allocation0]]
  $region41: #{tpu_custom_call.1} parent=0
    _
  %s5 = ssub.s32 1, %s3
  %s6 = scalar_select 0, %s5, %s3
  loop: start=0, step=1, limit=4
  $region2: #{tpu_custom_call.1} parent=0 // loop_pre_header
    _
  $region3: #{tpu_custom_call.1} parent=0 // loop_header
    %s8 = sphi 0, %s12
    %p9 = scmp.ge.s32.totalorder %s8, 4
    %s16 = sphi 0, %s16
    %s18 = sphi 0, %s16
    %s19 = sphi 0, %s18
    %s33 = sphi 0, %s19
    %s39 = sphi 0, %s41
    %s42 = sphi 0, %s39
    %s43 = sphi 0, %s42
    %s59 = sphi 0, %s43
    %s65 = sphi 0, %s67
    %s68 = sphi 0, %s65
    %s69 = sphi 0, %s68
    %s85 = sphi 0, %s69
  $region4: #{tpu_custom_call.1} parent=0 // loop_header_branch
    %11 = sbr.rel (%p9) target = $region8
  $region5: #{tpu_custom_call.1} parent=0 // loop_body
    %s13 = ssub.s32 %s8, 1
    %s14 = ssub.s32 %s8, 2
    %s15 = sadd.s32 %s8, 1
    %s17 = sadd.s32 %s16, 1
    %p20 = scmp.eq.s32.totalorder %s8, 1
    %p21 = scmp.ne.s32.totalorder %s16, %s18
    %p22 = scmp.eq.s32.totalorder %s8, 0
    %p23 = por %p21, %p22
    %p24 = scmp.ne.s32.totalorder %s16, %s18
    %p25 = scmp.eq.s32.totalorder %s13, 1
    %p26 = por %p24, %p25
    %p27 = scmp.ne.s32.totalorder %s18, %s19
    %p28 = scmp.eq.s32.totalorder %s13, 0
    %p29 = por %p27, %p28
    %p30 = scmp.ne.s32.totalorder %s18, %s19
    %p31 = scmp.eq.s32.totalorder %s14, 1
    %p32 = por %p30, %p31
    %p34 = scmp.ne.s32.totalorder %s19, %s33
    %p35 = scmp.eq.s32.totalorder %s14, 0
    %p36 = por %p34, %p35
    %s37 = ssub.s32 %s8, %s15
    %p38 = scmp.eq.s32.totalorder %s37, 0
    %s40 = sadd.s32 %s39, 1
    %s41 = scalar_select %p38, %s39, %s40
    %p44 = pneg %p38
    %p45 = scmp.eq.s32.totalorder %s8, 1
    %p46 = por %p44, %p45
    %p47 = scmp.ne.s32.totalorder %s39, %s42
    %p48 = scmp.eq.s32.totalorder %s8, 0
    %p49 = por %p47, %p48
    %p50 = scmp.ne.s32.totalorder %s39, %s42
    %p51 = scmp.eq.s32.totalorder %s13, 1
    %p52 = por %p50, %p51
    %p53 = scmp.ne.s32.totalorder %s42, %s43
    %p54 = scmp.eq.s32.totalorder %s13, 0
    %p55 = por %p53, %p54
    %p56 = scmp.ne.s32.totalorder %s42, %s43
    %p57 = scmp.eq.s32.totalorder %s14, 1
    %p58 = por %p56, %p57
    %p60 = scmp.ne.s32.totalorder %s43, %s59
    %p61 = scmp.eq.s32.totalorder %s14, 0
    %p62 = por %p60, %p61
    %s63 = ssub.s32 %s8, %s15
    %p64 = scmp.eq.s32.totalorder %s63, 0
    %s66 = sadd.s32 %s65, 1
    %s67 = scalar_select %p64, %s65, %s66
    %p70 = pneg %p64
    %p71 = scmp.eq.s32.totalorder %s8, 1
    %p72 = por %p70, %p71
    %p73 = scmp.ne.s32.totalorder %s65, %s68
    %p74 = scmp.eq.s32.totalorder %s8, 0
    %p75 = por %p73, %p74
    %p76 = scmp.ne.s32.totalorder %s65, %s68
    %p77 = scmp.eq.s32.totalorder %s13, 1
    %p78 = por %p76, %p77
    %p79 = scmp.ne.s32.totalorder %s68, %s69
    %p80 = scmp.eq.s32.totalorder %s13, 0
    %p81 = por %p79, %p80
    %p82 = scmp.ne.s32.totalorder %s68, %s69
    %p83 = scmp.eq.s32.totalorder %s14, 1
    %p84 = por %p82, %p83
    %p86 = scmp.ne.s32.totalorder %s69, %s85
    %p87 = scmp.eq.s32.totalorder %s14, 0
    %p88 = por %p86, %p87
    %p89 = scmp.le.s32.totalorder 1, %s8
    %p90 = scmp.lt.s32.totalorder %s8, 3
    %p91 = pnand %p89, %p90
    %p92 = pneg %p91
    // Predicated region
    $region9: #{tpu_custom_call.1} parent=5 // pred_check
      _
    $region10: #{tpu_custom_call.1} parent=5 // pred_check_branch
      %94 = sbr.rel (%p91) target = $region12
    $region11: #{tpu_custom_call.1} parent=5 // pred_region
      %s95 = ssub.s32 %s8, 1
      // Predicated region
      $region13: #{tpu_custom_call.1} parent=11 // pred_check
        %p96 = pneg %p29
      $region14: #{tpu_custom_call.1} parent=11 // pred_check_branch
        %98 = sbr.rel (%p96) target = $region16
      $region15: #{tpu_custom_call.1} parent=11 // pred_region
        _
      $region16: #{tpu_custom_call.1} parent=11 // pred_fallthru
        _
    $region12: #{tpu_custom_call.1} parent=5 // pred_fallthru
      _
    %p99 = scmp.lt.s32.totalorder %s8, 2
    // Predicated region
    $region17: #{tpu_custom_call.1} parent=5 // pred_check
      %p100 = pneg %p99
    $region18: #{tpu_custom_call.1} parent=5 // pred_check_branch
      %102 = sbr.rel (%p100) target = $region20
    $region19: #{tpu_custom_call.1} parent=5 // pred_region
      // Predicated region
      $region21: #{tpu_custom_call.1} parent=19 // pred_check
        %p103 = pneg %p49
      $region22: #{tpu_custom_call.1} parent=19 // pred_check_branch
        %105 = sbr.rel (%p103) target = $region24
      $region23: #{tpu_custom_call.1} parent=19 // pred_region
        %s106 = smul.u32 84, %s8
        %p107 = scmp.lt.s32.totalorder %s106, 167
        %s108 = scalar_select %p107, %s106, 167
        %s109 = smul.addr %s108, 2
        %s110 = smul.addr %s109, 8
        %s111 = scalar_lea.vmem %s1, %s110
        %s112 = smul.u32 84, %s8
      $region24: #{tpu_custom_call.1} parent=19 // pred_fallthru
        _
    $region20: #{tpu_custom_call.1} parent=5 // pred_fallthru
      _
    %p113 = scmp.le.s32.totalorder 1, %s8
    %p114 = scmp.lt.s32.totalorder %s8, 3
    %p115 = pnand %p113, %p114
    %p116 = pneg %p115
    // Predicated region
    $region25: #{tpu_custom_call.1} parent=5 // pred_check
      _
    $region26: #{tpu_custom_call.1} parent=5 // pred_check_branch
      %118 = sbr.rel (%p115) target = $region28
    $region27: #{tpu_custom_call.1} parent=5 // pred_region
      %s119 = ssub.s32 %s8, 1
      %p120 = pneg %p29
      %p121 = pneg %p26
      %s122 = smul.u32 84, %s13
      %p123 = scmp.lt.s32.totalorder %s122, 167
      %s124 = scalar_select %p123, %s122, 167
      %s125 = smul.addr %s124, 2
      %s126 = smul.addr %s125, 8
      %s127 = scalar_lea.vmem %s1, %s126
      %p128 = pneg %p55
      %p129 = pneg %p52
      %p130 = pneg %p81
      %p131 = pneg %p78
      %s132 = smul.u32 84, %s13
      %p133 = scmp.lt.s32.totalorder %s132, 167
      %s134 = scalar_select %p133, %s132, 167
      %s135 = smul.addr %s134, 2
      %s136 = smul.addr %s135, 8
      %s137 = scalar_lea.vmem %s2, %s136
      %s138 = smul.u32 84, %s13
      %p139 = scmp.lt.s32.totalorder %s138, 167
      %s140 = scalar_select %p139, %s138, 167
      %s141 = smul.addr %s140, 2
      %s142 = smul.addr %s141, 8
      %s143 = scalar_lea.vmem %s1, %s142
      %s144 = smul.u32 84, %s13
      %s145 = smul.u32 84, %s13
      %p146 = scmp.lt.s32.totalorder %s145, 167
      %s147 = scalar_select %p146, %s145, 167
      %s148 = smul.addr %s147, 2
      %s149 = smul.addr %s148, 8
      %s150 = scalar_lea.vmem %s2, %s149
      %s151 = smul.u32 84, %s13
      %s152 = smul.u32 %s13, 672
      %s153 = scalar_lea.vmem %s0, %s152
      %v154 = vld [vmem:[%s153] sm:$0xff]
      %v155 = vld [vmem:[%s153 + $0x8] sm:$0xff]
      %v156 = vld [vmem:[%s153 + $0x10] sm:$0xff]
      %v157 = vld [vmem:[%s153 + $0x18] sm:$0xff]
      %v158 = vld [vmem:[%s153 + $0x20] sm:$0xff]
      %v159 = vld [vmem:[%s153 + $0x28] sm:$0xff]
      %v160 = vld [vmem:[%s153 + $0x30] sm:$0xff]
      %v161 = vld [vmem:[%s153 + $0x38] sm:$0xff]
      %v162 = vld [vmem:[%s153 + $0x40] sm:$0xff]
      %v163 = vld [vmem:[%s153 + $0x48] sm:$0xff]
      %v164 = vld [vmem:[%s153 + $0x50] sm:$0xff]
      %v165 = vld [vmem:[%s153 + $0x58] sm:$0xff]
      %v166 = vld [vmem:[%s153 + $0x60] sm:$0xff]
      %v167 = vld [vmem:[%s153 + $0x68] sm:$0xff]
      %v168 = vld [vmem:[%s153 + $0x70] sm:$0xff]
      %v169 = vld [vmem:[%s153 + $0x78] sm:$0xff]
      %v170 = vld [vmem:[%s153 + $0x80] sm:$0xff]
      %v171 = vld [vmem:[%s153 + $0x88] sm:$0xff]
      %v172 = vld [vmem:[%s153 + $0x90] sm:$0xff]
      %v173 = vld [vmem:[%s153 + $0x98] sm:$0xff]
      %v174 = vld [vmem:[%s153 + $0xa0] sm:$0xff]
      %v175 = vld [vmem:[%s153 + $0xa8] sm:$0xff]
      %v176 = vld [vmem:[%s153 + $0xb0] sm:$0xff]
      %v177 = vld [vmem:[%s153 + $0xb8] sm:$0xff]
      %v178 = vld [vmem:[%s153 + $0xc0] sm:$0xff]
      %v179 = vld [vmem:[%s153 + $0xc8] sm:$0xff]
      %v180 = vld [vmem:[%s153 + $0xd0] sm:$0xff]
      %v181 = vld [vmem:[%s153 + $0xd8] sm:$0xff]
      %v182 = vld [vmem:[%s153 + $0xe0] sm:$0xff]
      %v183 = vld [vmem:[%s153 + $0xe8] sm:$0xff]
      %v184 = vld [vmem:[%s153 + $0xf0] sm:$0xff]
      %v185 = vld [vmem:[%s153 + $0xf8] sm:$0xff]
      %v186 = vld [vmem:[%s153 + $0x100] sm:$0xff]
      %v187 = vld [vmem:[%s153 + $0x108] sm:$0xff]
      %v188 = vld [vmem:[%s153 + $0x110] sm:$0xff]
      %v189 = vld [vmem:[%s153 + $0x118] sm:$0xff]
      %v190 = vld [vmem:[%s153 + $0x120] sm:$0xff]
      %v191 = vld [vmem:[%s153 + $0x128] sm:$0xff]
      %v192 = vld [vmem:[%s153 + $0x130] sm:$0xff]
      %v193 = vld [vmem:[%s153 + $0x138] sm:$0xff]
      %v194 = vld [vmem:[%s153 + $0x140] sm:$0xff]
      %v195 = vld [vmem:[%s153 + $0x148] sm:$0xff]
      %v196 = vld [vmem:[%s153 + $0x150] sm:$0xff]
      %v197 = vld [vmem:[%s153 + $0x158] sm:$0xff]
      %v198 = vld [vmem:[%s153 + $0x160] sm:$0xff]
      %v199 = vld [vmem:[%s153 + $0x168] sm:$0xff]
      %v200 = vld [vmem:[%s153 + $0x170] sm:$0xff]
      %v201 = vld [vmem:[%s153 + $0x178] sm:$0xff]
      %v202 = vld [vmem:[%s153 + $0x180] sm:$0xff]
      %v203 = vld [vmem:[%s153 + $0x188] sm:$0xff]
      %v204 = vld [vmem:[%s153 + $0x190] sm:$0xff]
      %v205 = vld [vmem:[%s153 + $0x198] sm:$0xff]
      %v206 = vld [vmem:[%s153 + $0x1a0] sm:$0xff]
      %v207 = vld [vmem:[%s153 + $0x1a8] sm:$0xff]
      %v208 = vld [vmem:[%s153 + $0x1b0] sm:$0xff]
      %v209 = vld [vmem:[%s153 + $0x1b8] sm:$0xff]
      %v210 = vld [vmem:[%s153 + $0x1c0] sm:$0xff]
      %v211 = vld [vmem:[%s153 + $0x1c8] sm:$0xff]
      %v212 = vld [vmem:[%s153 + $0x1d0] sm:$0xff]
      %v213 = vld [vmem:[%s153 + $0x1d8] sm:$0xff]
      %v214 = vld [vmem:[%s153 + $0x1e0] sm:$0xff]
      %v215 = vld [vmem:[%s153 + $0x1e8] sm:$0xff]
      %v216 = vld [vmem:[%s153 + $0x1f0] sm:$0xff]
      %v217 = vld [vmem:[%s153 + $0x1f8] sm:$0xff]
      %v218 = vld [vmem:[%s153 + $0x200] sm:$0xff]
      %v219 = vld [vmem:[%s153 + $0x208] sm:$0xff]
      %v220 = vld [vmem:[%s153 + $0x210] sm:$0xff]
      %v221 = vld [vmem:[%s153 + $0x218] sm:$0xff]
      %v222 = vld [vmem:[%s153 + $0x220] sm:$0xff]
      %v223 = vld [vmem:[%s153 + $0x228] sm:$0xff]
      %v224 = vld [vmem:[%s153 + $0x230] sm:$0xff]
      %v225 = vld [vmem:[%s153 + $0x238] sm:$0xff]
      %v226 = vld [vmem:[%s153 + $0x240] sm:$0xff]
      %v227 = vld [vmem:[%s153 + $0x248] sm:$0xff]
      %v228 = vld [vmem:[%s153 + $0x250] sm:$0xff]
      %v229 = vld [vmem:[%s153 + $0x258] sm:$0xff]
      %v230 = vld [vmem:[%s153 + $0x260] sm:$0xff]
      %v231 = vld [vmem:[%s153 + $0x268] sm:$0xff]
      %v232 = vld [vmem:[%s153 + $0x270] sm:$0xff]
      %v233 = vld [vmem:[%s153 + $0x278] sm:$0xff]
      %v234 = vld [vmem:[%s153 + $0x280] sm:$0xff]
      %v235 = vld [vmem:[%s153 + $0x288] sm:$0xff]
      %v236 = vld [vmem:[%s153 + $0x290] sm:$0xff]
      %v237 = vld [vmem:[%s153 + $0x298] sm:$0xff]
      %v238 = vxor.u32 %v154, 2147483648
      %v239 = vxor.u32 %v155, 2147483648
      %v240 = vxor.u32 %v156, 2147483648
      %v241 = vxor.u32 %v157, 2147483648
      %v242 = vxor.u32 %v158, 2147483648
      %v243 = vxor.u32 %v159, 2147483648
      %v244 = vxor.u32 %v160, 2147483648
      %v245 = vxor.u32 %v161, 2147483648
      %v246 = vxor.u32 %v162, 2147483648
      %v247 = vxor.u32 %v163, 2147483648
      %v248 = vxor.u32 %v164, 2147483648
      %v249 = vxor.u32 %v165, 2147483648
      %v250 = vxor.u32 %v166, 2147483648
      %v251 = vxor.u32 %v167, 2147483648
      %v252 = vxor.u32 %v168, 2147483648
      %v253 = vxor.u32 %v169, 2147483648
      %v254 = vxor.u32 %v170, 2147483648
      %v255 = vxor.u32 %v171, 2147483648
      %v256 = vxor.u32 %v172, 2147483648
      %v257 = vxor.u32 %v173, 2147483648
      %v258 = vxor.u32 %v174, 2147483648
      %v259 = vxor.u32 %v175, 2147483648
      %v260 = vxor.u32 %v176, 2147483648
      %v261 = vxor.u32 %v177, 2147483648
      %v262 = vxor.u32 %v178, 2147483648
      %v263 = vxor.u32 %v179, 2147483648
      %v264 = vxor.u32 %v180, 2147483648
      %v265 = vxor.u32 %v181, 2147483648
      %v266 = vxor.u32 %v182, 2147483648
      %v267 = vxor.u32 %v183, 2147483648
      %v268 = vxor.u32 %v184, 2147483648
      %v269 = vxor.u32 %v185, 2147483648
      %v270 = vxor.u32 %v186, 2147483648
      %v271 = vxor.u32 %v187, 2147483648
      %v272 = vxor.u32 %v188, 2147483648
      %v273 = vxor.u32 %v189, 2147483648
      %v274 = vxor.u32 %v190, 2147483648
      %v275 = vxor.u32 %v191, 2147483648
      %v276 = vxor.u32 %v192, 2147483648
      %v277 = vxor.u32 %v193, 2147483648
      %v278 = vxor.u32 %v194, 2147483648
      %v279 = vxor.u32 %v195, 2147483648
      %v280 = vxor.u32 %v196, 2147483648
      %v281 = vxor.u32 %v197, 2147483648
      %v282 = vxor.u32 %v198, 2147483648
      %v283 = vxor.u32 %v199, 2147483648
      %v284 = vxor.u32 %v200, 2147483648
      %v285 = vxor.u32 %v201, 2147483648
      %v286 = vxor.u32 %v202, 2147483648
      %v287 = vxor.u32 %v203, 2147483648
      %v288 = vxor.u32 %v204, 2147483648
      %v289 = vxor.u32 %v205, 2147483648
      %v290 = vxor.u32 %v206, 2147483648
      %v291 = vxor.u32 %v207, 2147483648
      %v292 = vxor.u32 %v208, 2147483648
      %v293 = vxor.u32 %v209, 2147483648
      %v294 = vxor.u32 %v210, 2147483648
      %v295 = vxor.u32 %v211, 2147483648
      %v296 = vxor.u32 %v212, 2147483648
      %v297 = vxor.u32 %v213, 2147483648
      %v298 = vxor.u32 %v214, 2147483648
      %v299 = vxor.u32 %v215, 2147483648
      %v300 = vxor.u32 %v216, 2147483648
      %v301 = vxor.u32 %v217, 2147483648
      %v302 = vxor.u32 %v218, 2147483648
      %v303 = vxor.u32 %v219, 2147483648
      %v304 = vxor.u32 %v220, 2147483648
      %v305 = vxor.u32 %v221, 2147483648
      %v306 = vxor.u32 %v222, 2147483648
      %v307 = vxor.u32 %v223, 2147483648
      %v308 = vxor.u32 %v224, 2147483648
      %v309 = vxor.u32 %v225, 2147483648
      %v310 = vxor.u32 %v226, 2147483648
      %v311 = vxor.u32 %v227, 2147483648
      %v312 = vxor.u32 %v228, 2147483648
      %v313 = vxor.u32 %v229, 2147483648
      %v314 = vxor.u32 %v230, 2147483648
      %v315 = vxor.u32 %v231, 2147483648
      %v316 = vxor.u32 %v232, 2147483648
      %v317 = vxor.u32 %v233, 2147483648
      %v318 = vxor.u32 %v234, 2147483648
      %v319 = vxor.u32 %v235, 2147483648
      %v320 = vxor.u32 %v236, 2147483648
      %v321 = vxor.u32 %v237, 2147483648
      %v322 = vmul.f32 %v238, 1.442695
      %v323 = vpow.pop %v322
      %v324 = vmul.f32 %v239, 1.442695
      %v325 = vpow.pop %v324
      %v326 = vmul.f32 %v240, 1.442695
      %v327 = vpow.pop %v326
      %v328 = vmul.f32 %v241, 1.442695
      %v329 = vpow.pop %v328
      %v330 = vmul.f32 %v242, 1.442695
      %v331 = vpow.pop %v330
      %v332 = vmul.f32 %v243, 1.442695
      %v333 = vpow.pop %v332
      %v334 = vmul.f32 %v244, 1.442695
      %v335 = vpow.pop %v334
      %v336 = vmul.f32 %v245, 1.442695
      %v337 = vpow.pop %v336
      %v338 = vmul.f32 %v246, 1.442695
      %v339 = vpow.pop %v338
      %v340 = vmul.f32 %v247, 1.442695
      %v341 = vpow.pop %v340
      %v342 = vmul.f32 %v248, 1.442695
      %v343 = vpow.pop %v342
      %v344 = vmul.f32 %v249, 1.442695
      %v345 = vpow.pop %v344
      %v346 = vmul.f32 %v250, 1.442695
      %v347 = vpow.pop %v346
      %v348 = vmul.f32 %v251, 1.442695
      %v349 = vpow.pop %v348
      %v350 = vmul.f32 %v252, 1.442695
      %v351 = vpow.pop %v350
      %v352 = vmul.f32 %v253, 1.442695
      %v353 = vpow.pop %v352
      %v354 = vmul.f32 %v254, 1.442695
      %v355 = vpow.pop %v354
      %v356 = vmul.f32 %v255, 1.442695
      %v357 = vpow.pop %v356
      %v358 = vmul.f32 %v256, 1.442695
      %v359 = vpow.pop %v358
      %v360 = vmul.f32 %v257, 1.442695
      %v361 = vpow.pop %v360
      %v362 = vmul.f32 %v258, 1.442695
      %v363 = vpow.pop %v362
      %v364 = vmul.f32 %v259, 1.442695
      %v365 = vpow.pop %v364
      %v366 = vmul.f32 %v260, 1.442695
      %v367 = vpow.pop %v366
      %v368 = vmul.f32 %v261, 1.442695
      %v369 = vpow.pop %v368
      %v370 = vmul.f32 %v262, 1.442695
      %v371 = vpow.pop %v370
      %v372 = vmul.f32 %v263, 1.442695
      %v373 = vpow.pop %v372
      %v374 = vmul.f32 %v264, 1.442695
      %v375 = vpow.pop %v374
      %v376 = vmul.f32 %v265, 1.442695
      %v377 = vpow.pop %v376
      %v378 = vmul.f32 %v266, 1.442695
      %v379 = vpow.pop %v378
      %v380 = vmul.f32 %v267, 1.442695
      %v381 = vpow.pop %v380
      %v382 = vmul.f32 %v268, 1.442695
      %v383 = vpow.pop %v382
      %v384 = vmul.f32 %v269, 1.442695
      %v385 = vpow.pop %v384
      %v386 = vmul.f32 %v270, 1.442695
      %v387 = vpow.pop %v386
      %v388 = vmul.f32 %v271, 1.442695
      %v389 = vpow.pop %v388
      %v390 = vmul.f32 %v272, 1.442695
      %v391 = vpow.pop %v390
      %v392 = vmul.f32 %v273, 1.442695
      %v393 = vpow.pop %v392
      %v394 = vmul.f32 %v274, 1.442695
      %v395 = vpow.pop %v394
      %v396 = vmul.f32 %v275, 1.442695
      %v397 = vpow.pop %v396
      %v398 = vmul.f32 %v276, 1.442695
      %v399 = vpow.pop %v398
      %v400 = vmul.f32 %v277, 1.442695
      %v401 = vpow.pop %v400
      %v402 = vmul.f32 %v278, 1.442695
      %v403 = vpow.pop %v402
      %v404 = vmul.f32 %v279, 1.442695
      %v405 = vpow.pop %v404
      %v406 = vmul.f32 %v280, 1.442695
      %v407 = vpow.pop %v406
      %v408 = vmul.f32 %v281, 1.442695
      %v409 = vpow.pop %v408
      %v410 = vmul.f32 %v282, 1.442695
      %v411 = vpow.pop %v410
      %v412 = vmul.f32 %v283, 1.442695
      %v413 = vpow.pop %v412
      %v414 = vmul.f32 %v284, 1.442695
      %v415 = vpow.pop %v414
      %v416 = vmul.f32 %v285, 1.442695
      %v417 = vpow.pop %v416
      %v418 = vmul.f32 %v286, 1.442695
      %v419 = vpow.pop %v418
      %v420 = vmul.f32 %v287, 1.442695
      %v421 = vpow.pop %v420
      %v422 = vmul.f32 %v288, 1.442695
      %v423 = vpow.pop %v422
      %v424 = vmul.f32 %v289, 1.442695
      %v425 = vpow.pop %v424
      %v426 = vmul.f32 %v290, 1.442695
      %v427 = vpow.pop %v426
      %v428 = vmul.f32 %v291, 1.442695
      %v429 = vpow.pop %v428
      %v430 = vmul.f32 %v292, 1.442695
      %v431 = vpow.pop %v430
      %v432 = vmul.f32 %v293, 1.442695
      %v433 = vpow.pop %v432
      %v434 = vmul.f32 %v294, 1.442695
      %v435 = vpow.pop %v434
      %v436 = vmul.f32 %v295, 1.442695
      %v437 = vpow.pop %v436
      %v438 = vmul.f32 %v296, 1.442695
      %v439 = vpow.pop %v438
      %v440 = vmul.f32 %v297, 1.442695
      %v441 = vpow.pop %v440
      %v442 = vmul.f32 %v298, 1.442695
      %v443 = vpow.pop %v442
      %v444 = vmul.f32 %v299, 1.442695
      %v445 = vpow.pop %v444
      %v446 = vmul.f32 %v300, 1.442695
      %v447 = vpow.pop %v446
      %v448 = vmul.f32 %v301, 1.442695
      %v449 = vpow.pop %v448
      %v450 = vmul.f32 %v302, 1.442695
      %v451 = vpow.pop %v450
      %v452 = vmul.f32 %v303, 1.442695
      %v453 = vpow.pop %v452
      %v454 = vmul.f32 %v304, 1.442695
      %v455 = vpow.pop %v454
      %v456 = vmul.f32 %v305, 1.442695
      %v457 = vpow.pop %v456
      %v458 = vmul.f32 %v306, 1.442695
      %v459 = vpow.pop %v458
      %v460 = vmul.f32 %v307, 1.442695
      %v461 = vpow.pop %v460
      %v462 = vmul.f32 %v308, 1.442695
      %v463 = vpow.pop %v462
      %v464 = vmul.f32 %v309, 1.442695
      %v465 = vpow.pop %v464
      %v466 = vmul.f32 %v310, 1.442695
      %v467 = vpow.pop %v466
      %v468 = vmul.f32 %v311, 1.442695
      %v469 = vpow.pop %v468
      %v470 = vmul.f32 %v312, 1.442695
      %v471 = vpow.pop %v470
      %v472 = vmul.f32 %v313, 1.442695
      %v473 = vpow.pop %v472
      %v474 = vmul.f32 %v314, 1.442695
      %v475 = vpow.pop %v474
      %v476 = vmul.f32 %v315, 1.442695
      %v477 = vpow.pop %v476
      %v478 = vmul.f32 %v316, 1.442695
      %v479 = vpow.pop %v478
      %v480 = vmul.f32 %v317, 1.442695
      %v481 = vpow.pop %v480
      %v482 = vmul.f32 %v318, 1.442695
      %v483 = vpow.pop %v482
      %v484 = vmul.f32 %v319, 1.442695
      %v485 = vpow.pop %v484
      %v486 = vmul.f32 %v320, 1.442695
      %v487 = vpow.pop %v486
      %v488 = vmul.f32 %v321, 1.442695
      %v489 = vpow.pop %v488
      %v490 = vadd.f32 %v323, 1.0
      %v491 = vadd.f32 %v325, 1.0
      %v492 = vadd.f32 %v327, 1.0
      %v493 = vadd.f32 %v329, 1.0
      %v494 = vadd.f32 %v331, 1.0
      %v495 = vadd.f32 %v333, 1.0
      %v496 = vadd.f32 %v335, 1.0
      %v497 = vadd.f32 %v337, 1.0
      %v498 = vadd.f32 %v339, 1.0
      %v499 = vadd.f32 %v341, 1.0
      %v500 = vadd.f32 %v343, 1.0
      %v501 = vadd.f32 %v345, 1.0
      %v502 = vadd.f32 %v347, 1.0
      %v503 = vadd.f32 %v349, 1.0
      %v504 = vadd.f32 %v351, 1.0
      %v505 = vadd.f32 %v353, 1.0
      %v506 = vadd.f32 %v355, 1.0
      %v507 = vadd.f32 %v357, 1.0
      %v508 = vadd.f32 %v359, 1.0
      %v509 = vadd.f32 %v361, 1.0
      %v510 = vadd.f32 %v363, 1.0
      %v511 = vadd.f32 %v365, 1.0
      %v512 = vadd.f32 %v367, 1.0
      %v513 = vadd.f32 %v369, 1.0
      %v514 = vadd.f32 %v371, 1.0
      %v515 = vadd.f32 %v373, 1.0
      %v516 = vadd.f32 %v375, 1.0
      %v517 = vadd.f32 %v377, 1.0
      %v518 = vadd.f32 %v379, 1.0
      %v519 = vadd.f32 %v381, 1.0
      %v520 = vadd.f32 %v383, 1.0
      %v521 = vadd.f32 %v385, 1.0
      %v522 = vadd.f32 %v387, 1.0
      %v523 = vadd.f32 %v389, 1.0
      %v524 = vadd.f32 %v391, 1.0
      %v525 = vadd.f32 %v393, 1.0
      %v526 = vadd.f32 %v395, 1.0
      %v527 = vadd.f32 %v397, 1.0
      %v528 = vadd.f32 %v399, 1.0
      %v529 = vadd.f32 %v401, 1.0
      %v530 = vadd.f32 %v403, 1.0
      %v531 = vadd.f32 %v405, 1.0
      %v532 = vadd.f32 %v407, 1.0
      %v533 = vadd.f32 %v409, 1.0
      %v534 = vadd.f32 %v411, 1.0
      %v535 = vadd.f32 %v413, 1.0
      %v536 = vadd.f32 %v415, 1.0
      %v537 = vadd.f32 %v417, 1.0
      %v538 = vadd.f32 %v419, 1.0
      %v539 = vadd.f32 %v421, 1.0
      %v540 = vadd.f32 %v423, 1.0
      %v541 = vadd.f32 %v425, 1.0
      %v542 = vadd.f32 %v427, 1.0
      %v543 = vadd.f32 %v429, 1.0
      %v544 = vadd.f32 %v431, 1.0
      %v545 = vadd.f32 %v433, 1.0
      %v546 = vadd.f32 %v435, 1.0
      %v547 = vadd.f32 %v437, 1.0
      %v548 = vadd.f32 %v439, 1.0
      %v549 = vadd.f32 %v441, 1.0
      %v550 = vadd.f32 %v443, 1.0
      %v551 = vadd.f32 %v445, 1.0
      %v552 = vadd.f32 %v447, 1.0
      %v553 = vadd.f32 %v449, 1.0
      %v554 = vadd.f32 %v451, 1.0
      %v555 = vadd.f32 %v453, 1.0
      %v556 = vadd.f32 %v455, 1.0
      %v557 = vadd.f32 %v457, 1.0
      %v558 = vadd.f32 %v459, 1.0
      %v559 = vadd.f32 %v461, 1.0
      %v560 = vadd.f32 %v463, 1.0
      %v561 = vadd.f32 %v465, 1.0
      %v562 = vadd.f32 %v467, 1.0
      %v563 = vadd.f32 %v469, 1.0
      %v564 = vadd.f32 %v471, 1.0
      %v565 = vadd.f32 %v473, 1.0
      %v566 = vadd.f32 %v475, 1.0
      %v567 = vadd.f32 %v477, 1.0
      %v568 = vadd.f32 %v479, 1.0
      %v569 = vadd.f32 %v481, 1.0
      %v570 = vadd.f32 %v483, 1.0
      %v571 = vadd.f32 %v485, 1.0
      %v572 = vadd.f32 %v487, 1.0
      %v573 = vadd.f32 %v489, 1.0
      %v574 = vrcp.pop %v490
      %v575 = vmul.f32 1.0, %v574
      %v576 = vrcp.pop %v491
      %v577 = vmul.f32 1.0, %v576
      %v578 = vrcp.pop %v492
      %v579 = vmul.f32 1.0, %v578
      %v580 = vrcp.pop %v493
      %v581 = vmul.f32 1.0, %v580
      %v582 = vrcp.pop %v494
      %v583 = vmul.f32 1.0, %v582
      %v584 = vrcp.pop %v495
      %v585 = vmul.f32 1.0, %v584
      %v586 = vrcp.pop %v496
      %v587 = vmul.f32 1.0, %v586
      %v588 = vrcp.pop %v497
      %v589 = vmul.f32 1.0, %v588
      %v590 = vrcp.pop %v498
      %v591 = vmul.f32 1.0, %v590
      %v592 = vrcp.pop %v499
      %v593 = vmul.f32 1.0, %v592
      %v594 = vrcp.pop %v500
      %v595 = vmul.f32 1.0, %v594
      %v596 = vrcp.pop %v501
      %v597 = vmul.f32 1.0, %v596
      %v598 = vrcp.pop %v502
      %v599 = vmul.f32 1.0, %v598
      %v600 = vrcp.pop %v503
      %v601 = vmul.f32 1.0, %v600
      %v602 = vrcp.pop %v504
      %v603 = vmul.f32 1.0, %v602
      %v604 = vrcp.pop %v505
      %v605 = vmul.f32 1.0, %v604
      %v606 = vrcp.pop %v506
      %v607 = vmul.f32 1.0, %v606
      %v608 = vrcp.pop %v507
      %v609 = vmul.f32 1.0, %v608
      %v610 = vrcp.pop %v508
      %v611 = vmul.f32 1.0, %v610
      %v612 = vrcp.pop %v509
      %v613 = vmul.f32 1.0, %v612
      %v614 = vrcp.pop %v510
      %v615 = vmul.f32 1.0, %v614
      %v616 = vrcp.pop %v511
      %v617 = vmul.f32 1.0, %v616
      %v618 = vrcp.pop %v512
      %v619 = vmul.f32 1.0, %v618
      %v620 = vrcp.pop %v513
      %v621 = vmul.f32 1.0, %v620
      %v622 = vrcp.pop %v514
      %v623 = vmul.f32 1.0, %v622
      %v624 = vrcp.pop %v515
      %v625 = vmul.f32 1.0, %v624
      %v626 = vrcp.pop %v516
      %v627 = vmul.f32 1.0, %v626
      %v628 = vrcp.pop %v517
      %v629 = vmul.f32 1.0, %v628
      %v630 = vrcp.pop %v518
      %v631 = vmul.f32 1.0, %v630
      %v632 = vrcp.pop %v519
      %v633 = vmul.f32 1.0, %v632
      %v634 = vrcp.pop %v520
      %v635 = vmul.f32 1.0, %v634
      %v636 = vrcp.pop %v521
      %v637 = vmul.f32 1.0, %v636
      %v638 = vrcp.pop %v522
      %v639 = vmul.f32 1.0, %v638
      %v640 = vrcp.pop %v523
      %v641 = vmul.f32 1.0, %v640
      %v642 = vrcp.pop %v524
      %v643 = vmul.f32 1.0, %v642
      %v644 = vrcp.pop %v525
      %v645 = vmul.f32 1.0, %v644
      %v646 = vrcp.pop %v526
      %v647 = vmul.f32 1.0, %v646
      %v648 = vrcp.pop %v527
      %v649 = vmul.f32 1.0, %v648
      %v650 = vrcp.pop %v528
      %v651 = vmul.f32 1.0, %v650
      %v652 = vrcp.pop %v529
      %v653 = vmul.f32 1.0, %v652
      %v654 = vrcp.pop %v530
      %v655 = vmul.f32 1.0, %v654
      %v656 = vrcp.pop %v531
      %v657 = vmul.f32 1.0, %v656
      %v658 = vrcp.pop %v532
      %v659 = vmul.f32 1.0, %v658
      %v660 = vrcp.pop %v533
      %v661 = vmul.f32 1.0, %v660
      %v662 = vrcp.pop %v534
      %v663 = vmul.f32 1.0, %v662
      %v664 = vrcp.pop %v535
      %v665 = vmul.f32 1.0, %v664
      %v666 = vrcp.pop %v536
      %v667 = vmul.f32 1.0, %v666
      %v668 = vrcp.pop %v537
      %v669 = vmul.f32 1.0, %v668
      %v670 = vrcp.pop %v538
      %v671 = vmul.f32 1.0, %v670
      %v672 = vrcp.pop %v539
      %v673 = vmul.f32 1.0, %v672
      %v674 = vrcp.pop %v540
      %v675 = vmul.f32 1.0, %v674
      %v676 = vrcp.pop %v541
      %v677 = vmul.f32 1.0, %v676
      %v678 = vrcp.pop %v542
      %v679 = vmul.f32 1.0, %v678
      %v680 = vrcp.pop %v543
      %v681 = vmul.f32 1.0, %v680
      %v682 = vrcp.pop %v544
      %v683 = vmul.f32 1.0, %v682
      %v684 = vrcp.pop %v545
      %v685 = vmul.f32 1.0, %v684
      %v686 = vrcp.pop %v546
      %v687 = vmul.f32 1.0, %v686
      %v688 = vrcp.pop %v547
      %v689 = vmul.f32 1.0, %v688
      %v690 = vrcp.pop %v548
      %v691 = vmul.f32 1.0, %v690
      %v692 = vrcp.pop %v549
      %v693 = vmul.f32 1.0, %v692
      %v694 = vrcp.pop %v550
      %v695 = vmul.f32 1.0, %v694
      %v696 = vrcp.pop %v551
      %v697 = vmul.f32 1.0, %v696
      %v698 = vrcp.pop %v552
      %v699 = vmul.f32 1.0, %v698
      %v700 = vrcp.pop %v553
      %v701 = vmul.f32 1.0, %v700
      %v702 = vrcp.pop %v554
      %v703 = vmul.f32 1.0, %v702
      %v704 = vrcp.pop %v555
      %v705 = vmul.f32 1.0, %v704
      %v706 = vrcp.pop %v556
      %v707 = vmul.f32 1.0, %v706
      %v708 = vrcp.pop %v557
      %v709 = vmul.f32 1.0, %v708
      %v710 = vrcp.pop %v558
      %v711 = vmul.f32 1.0, %v710
      %v712 = vrcp.pop %v559
      %v713 = vmul.f32 1.0, %v712
      %v714 = vrcp.pop %v560
      %v715 = vmul.f32 1.0, %v714
      %v716 = vrcp.pop %v561
      %v717 = vmul.f32 1.0, %v716
      %v718 = vrcp.pop %v562
      %v719 = vmul.f32 1.0, %v718
      %v720 = vrcp.pop %v563
      %v721 = vmul.f32 1.0, %v720
      %v722 = vrcp.pop %v564
      %v723 = vmul.f32 1.0, %v722
      %v724 = vrcp.pop %v565
      %v725 = vmul.f32 1.0, %v724
      %v726 = vrcp.pop %v566
      %v727 = vmul.f32 1.0, %v726
      %v728 = vrcp.pop %v567
      %v729 = vmul.f32 1.0, %v728
      %v730 = vrcp.pop %v568
      %v731 = vmul.f32 1.0, %v730
      %v732 = vrcp.pop %v569
      %v733 = vmul.f32 1.0, %v732
      %v734 = vrcp.pop %v570
      %v735 = vmul.f32 1.0, %v734
      %v736 = vrcp.pop %v571
      %v737 = vmul.f32 1.0, %v736
      %v738 = vrcp.pop %v572
      %v739 = vmul.f32 1.0, %v738
      %v740 = vrcp.pop %v573
      %v741 = vmul.f32 1.0, %v740
      %v742 = vld [vmem:[%s143] sm:$0xff]
      %v743 = vld [vmem:[%s143 + $0x8] sm:$0xff]
      %v744 = vld [vmem:[%s143 + $0x10] sm:$0xff]
      %v745 = vld [vmem:[%s143 + $0x18] sm:$0xff]
      %v746 = vld [vmem:[%s143 + $0x20] sm:$0xff]
      %v747 = vld [vmem:[%s143 + $0x28] sm:$0xff]
      %v748 = vld [vmem:[%s143 + $0x30] sm:$0xff]
      %v749 = vld [vmem:[%s143 + $0x38] sm:$0xff]
      %v750 = vld [vmem:[%s143 + $0x40] sm:$0xff]
      %v751 = vld [vmem:[%s143 + $0x48] sm:$0xff]
      %v752 = vld [vmem:[%s143 + $0x50] sm:$0xff]
      %v753 = vld [vmem:[%s143 + $0x58] sm:$0xff]
      %v754 = vld [vmem:[%s143 + $0x60] sm:$0xff]
      %v755 = vld [vmem:[%s143 + $0x68] sm:$0xff]
      %v756 = vld [vmem:[%s143 + $0x70] sm:$0xff]
      %v757 = vld [vmem:[%s143 + $0x78] sm:$0xff]
      %v758 = vld [vmem:[%s143 + $0x80] sm:$0xff]
      %v759 = vld [vmem:[%s143 + $0x88] sm:$0xff]
      %v760 = vld [vmem:[%s143 + $0x90] sm:$0xff]
      %v761 = vld [vmem:[%s143 + $0x98] sm:$0xff]
      %v762 = vld [vmem:[%s143 + $0xa0] sm:$0xff]
      %v763 = vld [vmem:[%s143 + $0xa8] sm:$0xff]
      %v764 = vld [vmem:[%s143 + $0xb0] sm:$0xff]
      %v765 = vld [vmem:[%s143 + $0xb8] sm:$0xff]
      %v766 = vld [vmem:[%s143 + $0xc0] sm:$0xff]
      %v767 = vld [vmem:[%s143 + $0xc8] sm:$0xff]
      %v768 = vld [vmem:[%s143 + $0xd0] sm:$0xff]
      %v769 = vld [vmem:[%s143 + $0xd8] sm:$0xff]
      %v770 = vld [vmem:[%s143 + $0xe0] sm:$0xff]
      %v771 = vld [vmem:[%s143 + $0xe8] sm:$0xff]
      %v772 = vld [vmem:[%s143 + $0xf0] sm:$0xff]
      %v773 = vld [vmem:[%s143 + $0xf8] sm:$0xff]
      %v774 = vld [vmem:[%s143 + $0x100] sm:$0xff]
      %v775 = vld [vmem:[%s143 + $0x108] sm:$0xff]
      %v776 = vld [vmem:[%s143 + $0x110] sm:$0xff]
      %v777 = vld [vmem:[%s143 + $0x118] sm:$0xff]
      %v778 = vld [vmem:[%s143 + $0x120] sm:$0xff]
      %v779 = vld [vmem:[%s143 + $0x128] sm:$0xff]
      %v780 = vld [vmem:[%s143 + $0x130] sm:$0xff]
      %v781 = vld [vmem:[%s143 + $0x138] sm:$0xff]
      %v782 = vld [vmem:[%s143 + $0x140] sm:$0xff]
      %v783 = vld [vmem:[%s143 + $0x148] sm:$0xff]
      %v784 = vld [vmem:[%s143 + $0x150] sm:$0xff]
      %v785 = vld [vmem:[%s143 + $0x158] sm:$0xff]
      %v786 = vld [vmem:[%s143 + $0x160] sm:$0xff]
      %v787 = vld [vmem:[%s143 + $0x168] sm:$0xff]
      %v788 = vld [vmem:[%s143 + $0x170] sm:$0xff]
      %v789 = vld [vmem:[%s143 + $0x178] sm:$0xff]
      %v790 = vld [vmem:[%s143 + $0x180] sm:$0xff]
      %v791 = vld [vmem:[%s143 + $0x188] sm:$0xff]
      %v792 = vld [vmem:[%s143 + $0x190] sm:$0xff]
      %v793 = vld [vmem:[%s143 + $0x198] sm:$0xff]
      %v794 = vld [vmem:[%s143 + $0x1a0] sm:$0xff]
      %v795 = vld [vmem:[%s143 + $0x1a8] sm:$0xff]
      %v796 = vld [vmem:[%s143 + $0x1b0] sm:$0xff]
      %v797 = vld [vmem:[%s143 + $0x1b8] sm:$0xff]
      %v798 = vld [vmem:[%s143 + $0x1c0] sm:$0xff]
      %v799 = vld [vmem:[%s143 + $0x1c8] sm:$0xff]
      %v800 = vld [vmem:[%s143 + $0x1d0] sm:$0xff]
      %v801 = vld [vmem:[%s143 + $0x1d8] sm:$0xff]
      %v802 = vld [vmem:[%s143 + $0x1e0] sm:$0xff]
      %v803 = vld [vmem:[%s143 + $0x1e8] sm:$0xff]
      %v804 = vld [vmem:[%s143 + $0x1f0] sm:$0xff]
      %v805 = vld [vmem:[%s143 + $0x1f8] sm:$0xff]
      %v806 = vld [vmem:[%s143 + $0x200] sm:$0xff]
      %v807 = vld [vmem:[%s143 + $0x208] sm:$0xff]
      %v808 = vld [vmem:[%s143 + $0x210] sm:$0xff]
      %v809 = vld [vmem:[%s143 + $0x218] sm:$0xff]
      %v810 = vld [vmem:[%s143 + $0x220] sm:$0xff]
      %v811 = vld [vmem:[%s143 + $0x228] sm:$0xff]
      %v812 = vld [vmem:[%s143 + $0x230] sm:$0xff]
      %v813 = vld [vmem:[%s143 + $0x238] sm:$0xff]
      %v814 = vld [vmem:[%s143 + $0x240] sm:$0xff]
      %v815 = vld [vmem:[%s143 + $0x248] sm:$0xff]
      %v816 = vld [vmem:[%s143 + $0x250] sm:$0xff]
      %v817 = vld [vmem:[%s143 + $0x258] sm:$0xff]
      %v818 = vld [vmem:[%s143 + $0x260] sm:$0xff]
      %v819 = vld [vmem:[%s143 + $0x268] sm:$0xff]
      %v820 = vld [vmem:[%s143 + $0x270] sm:$0xff]
      %v821 = vld [vmem:[%s143 + $0x278] sm:$0xff]
      %v822 = vld [vmem:[%s143 + $0x280] sm:$0xff]
      %v823 = vld [vmem:[%s143 + $0x288] sm:$0xff]
      %v824 = vld [vmem:[%s143 + $0x290] sm:$0xff]
      %v825 = vld [vmem:[%s143 + $0x298] sm:$0xff]
      %v826 = vld [vmem:[%s143 + $0x2a0] sm:$0xff]
      %v827 = vld [vmem:[%s143 + $0x2a8] sm:$0xff]
      %v828 = vld [vmem:[%s143 + $0x2b0] sm:$0xff]
      %v829 = vld [vmem:[%s143 + $0x2b8] sm:$0xff]
      %v830 = vld [vmem:[%s143 + $0x2c0] sm:$0xff]
      %v831 = vld [vmem:[%s143 + $0x2c8] sm:$0xff]
      %v832 = vld [vmem:[%s143 + $0x2d0] sm:$0xff]
      %v833 = vld [vmem:[%s143 + $0x2d8] sm:$0xff]
      %v834 = vld [vmem:[%s143 + $0x2e0] sm:$0xff]
      %v835 = vld [vmem:[%s143 + $0x2e8] sm:$0xff]
      %v836 = vld [vmem:[%s143 + $0x2f0] sm:$0xff]
      %v837 = vld [vmem:[%s143 + $0x2f8] sm:$0xff]
      %v838 = vld [vmem:[%s143 + $0x300] sm:$0xff]
      %v839 = vld [vmem:[%s143 + $0x308] sm:$0xff]
      %v840 = vld [vmem:[%s143 + $0x310] sm:$0xff]
      %v841 = vld [vmem:[%s143 + $0x318] sm:$0xff]
      %v842 = vld [vmem:[%s143 + $0x320] sm:$0xff]
      %v843 = vld [vmem:[%s143 + $0x328] sm:$0xff]
      %v844 = vld [vmem:[%s143 + $0x330] sm:$0xff]
      %v845 = vld [vmem:[%s143 + $0x338] sm:$0xff]
      %v846 = vld [vmem:[%s143 + $0x340] sm:$0xff]
      %v847 = vld [vmem:[%s143 + $0x348] sm:$0xff]
      %v848 = vld [vmem:[%s143 + $0x350] sm:$0xff]
      %v849 = vld [vmem:[%s143 + $0x358] sm:$0xff]
      %v850 = vld [vmem:[%s143 + $0x360] sm:$0xff]
      %v851 = vld [vmem:[%s143 + $0x368] sm:$0xff]
      %v852 = vld [vmem:[%s143 + $0x370] sm:$0xff]
      %v853 = vld [vmem:[%s143 + $0x378] sm:$0xff]
      %v854 = vld [vmem:[%s143 + $0x380] sm:$0xff]
      %v855 = vld [vmem:[%s143 + $0x388] sm:$0xff]
      %v856 = vld [vmem:[%s143 + $0x390] sm:$0xff]
      %v857 = vld [vmem:[%s143 + $0x398] sm:$0xff]
      %v858 = vld [vmem:[%s143 + $0x3a0] sm:$0xff]
      %v859 = vld [vmem:[%s143 + $0x3a8] sm:$0xff]
      %v860 = vld [vmem:[%s143 + $0x3b0] sm:$0xff]
      %v861 = vld [vmem:[%s143 + $0x3b8] sm:$0xff]
      %v862 = vld [vmem:[%s143 + $0x3c0] sm:$0xff]
      %v863 = vld [vmem:[%s143 + $0x3c8] sm:$0xff]
      %v864 = vld [vmem:[%s143 + $0x3d0] sm:$0xff]
      %v865 = vld [vmem:[%s143 + $0x3d8] sm:$0xff]
      %v866 = vld [vmem:[%s143 + $0x3e0] sm:$0xff]
      %v867 = vld [vmem:[%s143 + $0x3e8] sm:$0xff]
      %v868 = vld [vmem:[%s143 + $0x3f0] sm:$0xff]
      %v869 = vld [vmem:[%s143 + $0x3f8] sm:$0xff]
      %v870 = vld [vmem:[%s143 + $0x400] sm:$0xff]
      %v871 = vld [vmem:[%s143 + $0x408] sm:$0xff]
      %v872 = vld [vmem:[%s143 + $0x410] sm:$0xff]
      %v873 = vld [vmem:[%s143 + $0x418] sm:$0xff]
      %v874 = vld [vmem:[%s143 + $0x420] sm:$0xff]
      %v875 = vld [vmem:[%s143 + $0x428] sm:$0xff]
      %v876 = vld [vmem:[%s143 + $0x430] sm:$0xff]
      %v877 = vld [vmem:[%s143 + $0x438] sm:$0xff]
      %v878 = vld [vmem:[%s143 + $0x440] sm:$0xff]
      %v879 = vld [vmem:[%s143 + $0x448] sm:$0xff]
      %v880 = vld [vmem:[%s143 + $0x450] sm:$0xff]
      %v881 = vld [vmem:[%s143 + $0x458] sm:$0xff]
      %v882 = vld [vmem:[%s143 + $0x460] sm:$0xff]
      %v883 = vld [vmem:[%s143 + $0x468] sm:$0xff]
      %v884 = vld [vmem:[%s143 + $0x470] sm:$0xff]
      %v885 = vld [vmem:[%s143 + $0x478] sm:$0xff]
      %v886 = vld [vmem:[%s143 + $0x480] sm:$0xff]
      %v887 = vld [vmem:[%s143 + $0x488] sm:$0xff]
      %v888 = vld [vmem:[%s143 + $0x490] sm:$0xff]
      %v889 = vld [vmem:[%s143 + $0x498] sm:$0xff]
      %v890 = vld [vmem:[%s143 + $0x4a0] sm:$0xff]
      %v891 = vld [vmem:[%s143 + $0x4a8] sm:$0xff]
      %v892 = vld [vmem:[%s143 + $0x4b0] sm:$0xff]
      %v893 = vld [vmem:[%s143 + $0x4b8] sm:$0xff]
      %v894 = vld [vmem:[%s143 + $0x4c0] sm:$0xff]
      %v895 = vld [vmem:[%s143 + $0x4c8] sm:$0xff]
      %v896 = vld [vmem:[%s143 + $0x4d0] sm:$0xff]
      %v897 = vld [vmem:[%s143 + $0x4d8] sm:$0xff]
      %v898 = vld [vmem:[%s143 + $0x4e0] sm:$0xff]
      %v899 = vld [vmem:[%s143 + $0x4e8] sm:$0xff]
      %v900 = vld [vmem:[%s143 + $0x4f0] sm:$0xff]
      %v901 = vld [vmem:[%s143 + $0x4f8] sm:$0xff]
      %v902 = vld [vmem:[%s143 + $0x500] sm:$0xff]
      %v903 = vld [vmem:[%s143 + $0x508] sm:$0xff]
      %v904 = vld [vmem:[%s143 + $0x510] sm:$0xff]
      %v905 = vld [vmem:[%s143 + $0x518] sm:$0xff]
      %v906 = vld [vmem:[%s143 + $0x520] sm:$0xff]
      %v907 = vld [vmem:[%s143 + $0x528] sm:$0xff]
      %v908 = vld [vmem:[%s143 + $0x530] sm:$0xff]
      %v909 = vld [vmem:[%s143 + $0x538] sm:$0xff]
      %911 = vset.pattern.permute.xlu0 0
      %912 = vperm.xlu0 %911, %v575
      %v913 = vpop.permute.xlu0 %912
      %916 = vset.pattern.permute.xlu0 0
      %917 = vperm.xlu0 %916, %v577
      %v918 = vpop.permute.xlu0 %917
      %921 = vset.pattern.permute.xlu0 0
      %922 = vperm.xlu0 %921, %v579
      %v923 = vpop.permute.xlu0 %922
      %926 = vset.pattern.permute.xlu0 0
      %927 = vperm.xlu0 %926, %v581
      %v928 = vpop.permute.xlu0 %927
      %931 = vset.pattern.permute.xlu0 0
      %932 = vperm.xlu0 %931, %v583
      %v933 = vpop.permute.xlu0 %932
      %936 = vset.pattern.permute.xlu0 0
      %937 = vperm.xlu0 %936, %v585
      %v938 = vpop.permute.xlu0 %937
      %941 = vset.pattern.permute.xlu0 0
      %942 = vperm.xlu0 %941, %v587
      %v943 = vpop.permute.xlu0 %942
      %946 = vset.pattern.permute.xlu0 0
      %947 = vperm.xlu0 %946, %v589
      %v948 = vpop.permute.xlu0 %947
      %951 = vset.pattern.permute.xlu0 0
      %952 = vperm.xlu0 %951, %v591
      %v953 = vpop.permute.xlu0 %952
      %956 = vset.pattern.permute.xlu0 0
      %957 = vperm.xlu0 %956, %v593
      %v958 = vpop.permute.xlu0 %957
      %961 = vset.pattern.permute.xlu0 0
      %962 = vperm.xlu0 %961, %v595
      %v963 = vpop.permute.xlu0 %962
      %966 = vset.pattern.permute.xlu0 0
      %967 = vperm.xlu0 %966, %v597
      %v968 = vpop.permute.xlu0 %967
      %971 = vset.pattern.permute.xlu0 0
      %972 = vperm.xlu0 %971, %v599
      %v973 = vpop.permute.xlu0 %972
      %976 = vset.pattern.permute.xlu0 0
      %977 = vperm.xlu0 %976, %v601
      %v978 = vpop.permute.xlu0 %977
      %981 = vset.pattern.permute.xlu0 0
      %982 = vperm.xlu0 %981, %v603
      %v983 = vpop.permute.xlu0 %982
      %986 = vset.pattern.permute.xlu0 0
      %987 = vperm.xlu0 %986, %v605
      %v988 = vpop.permute.xlu0 %987
      %991 = vset.pattern.permute.xlu0 0
      %992 = vperm.xlu0 %991, %v607
      %v993 = vpop.permute.xlu0 %992
      %996 = vset.pattern.permute.xlu0 0
      %997 = vperm.xlu0 %996, %v609
      %v998 = vpop.permute.xlu0 %997
      %1001 = vset.pattern.permute.xlu0 0
      %1002 = vperm.xlu0 %1001, %v611
      %v1003 = vpop.permute.xlu0 %1002
      %1006 = vset.pattern.permute.xlu0 0
      %1007 = vperm.xlu0 %1006, %v613
      %v1008 = vpop.permute.xlu0 %1007
      %1011 = vset.pattern.permute.xlu0 0
      %1012 = vperm.xlu0 %1011, %v615
      %v1013 = vpop.permute.xlu0 %1012
      %1016 = vset.pattern.permute.xlu0 0
      %1017 = vperm.xlu0 %1016, %v617
      %v1018 = vpop.permute.xlu0 %1017
      %1021 = vset.pattern.permute.xlu0 0
      %1022 = vperm.xlu0 %1021, %v619
      %v1023 = vpop.permute.xlu0 %1022
      %1026 = vset.pattern.permute.xlu0 0
      %1027 = vperm.xlu0 %1026, %v621
      %v1028 = vpop.permute.xlu0 %1027
      %1031 = vset.pattern.permute.xlu0 0
      %1032 = vperm.xlu0 %1031, %v623
      %v1033 = vpop.permute.xlu0 %1032
      %1036 = vset.pattern.permute.xlu0 0
      %1037 = vperm.xlu0 %1036, %v625
      %v1038 = vpop.permute.xlu0 %1037
      %1041 = vset.pattern.permute.xlu0 0
      %1042 = vperm.xlu0 %1041, %v627
      %v1043 = vpop.permute.xlu0 %1042
      %1046 = vset.pattern.permute.xlu0 0
      %1047 = vperm.xlu0 %1046, %v629
      %v1048 = vpop.permute.xlu0 %1047
      %1051 = vset.pattern.permute.xlu0 0
      %1052 = vperm.xlu0 %1051, %v631
      %v1053 = vpop.permute.xlu0 %1052
      %1056 = vset.pattern.permute.xlu0 0
      %1057 = vperm.xlu0 %1056, %v633
      %v1058 = vpop.permute.xlu0 %1057
      %1061 = vset.pattern.permute.xlu0 0
      %1062 = vperm.xlu0 %1061, %v635
      %v1063 = vpop.permute.xlu0 %1062
      %1066 = vset.pattern.permute.xlu0 0
      %1067 = vperm.xlu0 %1066, %v637
      %v1068 = vpop.permute.xlu0 %1067
      %1071 = vset.pattern.permute.xlu0 0
      %1072 = vperm.xlu0 %1071, %v639
      %v1073 = vpop.permute.xlu0 %1072
      %1076 = vset.pattern.permute.xlu0 0
      %1077 = vperm.xlu0 %1076, %v641
      %v1078 = vpop.permute.xlu0 %1077
      %1081 = vset.pattern.permute.xlu0 0
      %1082 = vperm.xlu0 %1081, %v643
      %v1083 = vpop.permute.xlu0 %1082
      %1086 = vset.pattern.permute.xlu0 0
      %1087 = vperm.xlu0 %1086, %v645
      %v1088 = vpop.permute.xlu0 %1087
      %1091 = vset.pattern.permute.xlu0 0
      %1092 = vperm.xlu0 %1091, %v647
      %v1093 = vpop.permute.xlu0 %1092
      %1096 = vset.pattern.permute.xlu0 0
      %1097 = vperm.xlu0 %1096, %v649
      %v1098 = vpop.permute.xlu0 %1097
      %1101 = vset.pattern.permute.xlu0 0
      %1102 = vperm.xlu0 %1101, %v651
      %v1103 = vpop.permute.xlu0 %1102
      %1106 = vset.pattern.permute.xlu0 0
      %1107 = vperm.xlu0 %1106, %v653
      %v1108 = vpop.permute.xlu0 %1107
      %1111 = vset.pattern.permute.xlu0 0
      %1112 = vperm.xlu0 %1111, %v655
      %v1113 = vpop.permute.xlu0 %1112
      %1116 = vset.pattern.permute.xlu0 0
      %1117 = vperm.xlu0 %1116, %v657
      %v1118 = vpop.permute.xlu0 %1117
      %1121 = vset.pattern.permute.xlu0 0
      %1122 = vperm.xlu0 %1121, %v659
      %v1123 = vpop.permute.xlu0 %1122
      %1126 = vset.pattern.permute.xlu0 0
      %1127 = vperm.xlu0 %1126, %v661
      %v1128 = vpop.permute.xlu0 %1127
      %1131 = vset.pattern.permute.xlu0 0
      %1132 = vperm.xlu0 %1131, %v663
      %v1133 = vpop.permute.xlu0 %1132
      %1136 = vset.pattern.permute.xlu0 0
      %1137 = vperm.xlu0 %1136, %v665
      %v1138 = vpop.permute.xlu0 %1137
      %1141 = vset.pattern.permute.xlu0 0
      %1142 = vperm.xlu0 %1141, %v667
      %v1143 = vpop.permute.xlu0 %1142
      %1146 = vset.pattern.permute.xlu0 0
      %1147 = vperm.xlu0 %1146, %v669
      %v1148 = vpop.permute.xlu0 %1147
      %1151 = vset.pattern.permute.xlu0 0
      %1152 = vperm.xlu0 %1151, %v671
      %v1153 = vpop.permute.xlu0 %1152
      %1156 = vset.pattern.permute.xlu0 0
      %1157 = vperm.xlu0 %1156, %v673
      %v1158 = vpop.permute.xlu0 %1157
      %1161 = vset.pattern.permute.xlu0 0
      %1162 = vperm.xlu0 %1161, %v675
      %v1163 = vpop.permute.xlu0 %1162
      %1166 = vset.pattern.permute.xlu0 0
      %1167 = vperm.xlu0 %1166, %v677
      %v1168 = vpop.permute.xlu0 %1167
      %1171 = vset.pattern.permute.xlu0 0
      %1172 = vperm.xlu0 %1171, %v679
      %v1173 = vpop.permute.xlu0 %1172
      %1176 = vset.pattern.permute.xlu0 0
      %1177 = vperm.xlu0 %1176, %v681
      %v1178 = vpop.permute.xlu0 %1177
      %1181 = vset.pattern.permute.xlu0 0
      %1182 = vperm.xlu0 %1181, %v683
      %v1183 = vpop.permute.xlu0 %1182
      %1186 = vset.pattern.permute.xlu0 0
      %1187 = vperm.xlu0 %1186, %v685
      %v1188 = vpop.permute.xlu0 %1187
      %1191 = vset.pattern.permute.xlu0 0
      %1192 = vperm.xlu0 %1191, %v687
      %v1193 = vpop.permute.xlu0 %1192
      %1196 = vset.pattern.permute.xlu0 0
      %1197 = vperm.xlu0 %1196, %v689
      %v1198 = vpop.permute.xlu0 %1197
      %1201 = vset.pattern.permute.xlu0 0
      %1202 = vperm.xlu0 %1201, %v691
      %v1203 = vpop.permute.xlu0 %1202
      %1206 = vset.pattern.permute.xlu0 0
      %1207 = vperm.xlu0 %1206, %v693
      %v1208 = vpop.permute.xlu0 %1207
      %1211 = vset.pattern.permute.xlu0 0
      %1212 = vperm.xlu0 %1211, %v695
      %v1213 = vpop.permute.xlu0 %1212
      %1216 = vset.pattern.permute.xlu0 0
      %1217 = vperm.xlu0 %1216, %v697
      %v1218 = vpop.permute.xlu0 %1217
      %1221 = vset.pattern.permute.xlu0 0
      %1222 = vperm.xlu0 %1221, %v699
      %v1223 = vpop.permute.xlu0 %1222
      %1226 = vset.pattern.permute.xlu0 0
      %1227 = vperm.xlu0 %1226, %v701
      %v1228 = vpop.permute.xlu0 %1227
      %1231 = vset.pattern.permute.xlu0 0
      %1232 = vperm.xlu0 %1231, %v703
      %v1233 = vpop.permute.xlu0 %1232
      %1236 = vset.pattern.permute.xlu0 0
      %1237 = vperm.xlu0 %1236, %v705
      %v1238 = vpop.permute.xlu0 %1237
      %1241 = vset.pattern.permute.xlu0 0
      %1242 = vperm.xlu0 %1241, %v707
      %v1243 = vpop.permute.xlu0 %1242
      %1246 = vset.pattern.permute.xlu0 0
      %1247 = vperm.xlu0 %1246, %v709
      %v1248 = vpop.permute.xlu0 %1247
      %1251 = vset.pattern.permute.xlu0 0
      %1252 = vperm.xlu0 %1251, %v711
      %v1253 = vpop.permute.xlu0 %1252
      %1256 = vset.pattern.permute.xlu0 0
      %1257 = vperm.xlu0 %1256, %v713
      %v1258 = vpop.permute.xlu0 %1257
      %1261 = vset.pattern.permute.xlu0 0
      %1262 = vperm.xlu0 %1261, %v715
      %v1263 = vpop.permute.xlu0 %1262
      %1266 = vset.pattern.permute.xlu0 0
      %1267 = vperm.xlu0 %1266, %v717
      %v1268 = vpop.permute.xlu0 %1267
      %1271 = vset.pattern.permute.xlu0 0
      %1272 = vperm.xlu0 %1271, %v719
      %v1273 = vpop.permute.xlu0 %1272
      %1276 = vset.pattern.permute.xlu0 0
      %1277 = vperm.xlu0 %1276, %v721
      %v1278 = vpop.permute.xlu0 %1277
      %1281 = vset.pattern.permute.xlu0 0
      %1282 = vperm.xlu0 %1281, %v723
      %v1283 = vpop.permute.xlu0 %1282
      %1286 = vset.pattern.permute.xlu0 0
      %1287 = vperm.xlu0 %1286, %v725
      %v1288 = vpop.permute.xlu0 %1287
      %1291 = vset.pattern.permute.xlu0 0
      %1292 = vperm.xlu0 %1291, %v727
      %v1293 = vpop.permute.xlu0 %1292
      %1296 = vset.pattern.permute.xlu0 0
      %1297 = vperm.xlu0 %1296, %v729
      %v1298 = vpop.permute.xlu0 %1297
      %1301 = vset.pattern.permute.xlu0 0
      %1302 = vperm.xlu0 %1301, %v731
      %v1303 = vpop.permute.xlu0 %1302
      %1306 = vset.pattern.permute.xlu0 0
      %1307 = vperm.xlu0 %1306, %v733
      %v1308 = vpop.permute.xlu0 %1307
      %1311 = vset.pattern.permute.xlu0 0
      %1312 = vperm.xlu0 %1311, %v735
      %v1313 = vpop.permute.xlu0 %1312
      %1316 = vset.pattern.permute.xlu0 0
      %1317 = vperm.xlu0 %1316, %v737
      %v1318 = vpop.permute.xlu0 %1317
      %1321 = vset.pattern.permute.xlu0 0
      %1322 = vperm.xlu0 %1321, %v739
      %v1323 = vpop.permute.xlu0 %1322
      %1326 = vset.pattern.permute.xlu0 0
      %1327 = vperm.xlu0 %1326, %v741
      %v1328 = vpop.permute.xlu0 %1327
      %v1330 = vmul.f32 %v742, %v913
      %v1331 = vmul.f32 %v743, %v913
      %v1332 = vmul.f32 %v744, %v918
      %v1333 = vmul.f32 %v745, %v918
      %v1334 = vmul.f32 %v746, %v923
      %v1335 = vmul.f32 %v747, %v923
      %v1336 = vmul.f32 %v748, %v928
      %v1337 = vmul.f32 %v749, %v928
      %v1338 = vmul.f32 %v750, %v933
      %v1339 = vmul.f32 %v751, %v933
      %v1340 = vmul.f32 %v752, %v938
      %v1341 = vmul.f32 %v753, %v938
      %v1342 = vmul.f32 %v754, %v943
      %v1343 = vmul.f32 %v755, %v943
      %v1344 = vmul.f32 %v756, %v948
      %v1345 = vmul.f32 %v757, %v948
      %v1346 = vmul.f32 %v758, %v953
      %v1347 = vmul.f32 %v759, %v953
      %v1348 = vmul.f32 %v760, %v958
      %v1349 = vmul.f32 %v761, %v958
      %v1350 = vmul.f32 %v762, %v963
      %v1351 = vmul.f32 %v763, %v963
      %v1352 = vmul.f32 %v764, %v968
      %v1353 = vmul.f32 %v765, %v968
      %v1354 = vmul.f32 %v766, %v973
      %v1355 = vmul.f32 %v767, %v973
      %v1356 = vmul.f32 %v768, %v978
      %v1357 = vmul.f32 %v769, %v978
      %v1358 = vmul.f32 %v770, %v983
      %v1359 = vmul.f32 %v771, %v983
      %v1360 = vmul.f32 %v772, %v988
      %v1361 = vmul.f32 %v773, %v988
      %v1362 = vmul.f32 %v774, %v993
      %v1363 = vmul.f32 %v775, %v993
      %v1364 = vmul.f32 %v776, %v998
      %v1365 = vmul.f32 %v777, %v998
      %v1366 = vmul.f32 %v778, %v1003
      %v1367 = vmul.f32 %v779, %v1003
      %v1368 = vmul.f32 %v780, %v1008
      %v1369 = vmul.f32 %v781, %v1008
      %v1370 = vmul.f32 %v782, %v1013
      %v1371 = vmul.f32 %v783, %v1013
      %v1372 = vmul.f32 %v784, %v1018
      %v1373 = vmul.f32 %v785, %v1018
      %v1374 = vmul.f32 %v786, %v1023
      %v1375 = vmul.f32 %v787, %v1023
      %v1376 = vmul.f32 %v788, %v1028
      %v1377 = vmul.f32 %v789, %v1028
      %v1378 = vmul.f32 %v790, %v1033
      %v1379 = vmul.f32 %v791, %v1033
      %v1380 = vmul.f32 %v792, %v1038
      %v1381 = vmul.f32 %v793, %v1038
      %v1382 = vmul.f32 %v794, %v1043
      %v1383 = vmul.f32 %v795, %v1043
      %v1384 = vmul.f32 %v796, %v1048
      %v1385 = vmul.f32 %v797, %v1048
      %v1386 = vmul.f32 %v798, %v1053
      %v1387 = vmul.f32 %v799, %v1053
      %v1388 = vmul.f32 %v800, %v1058
      %v1389 = vmul.f32 %v801, %v1058
      %v1390 = vmul.f32 %v802, %v1063
      %v1391 = vmul.f32 %v803, %v1063
      %v1392 = vmul.f32 %v804, %v1068
      %v1393 = vmul.f32 %v805, %v1068
      %v1394 = vmul.f32 %v806, %v1073
      %v1395 = vmul.f32 %v807, %v1073
      %v1396 = vmul.f32 %v808, %v1078
      %v1397 = vmul.f32 %v809, %v1078
      %v1398 = vmul.f32 %v810, %v1083
      %v1399 = vmul.f32 %v811, %v1083
      %v1400 = vmul.f32 %v812, %v1088
      %v1401 = vmul.f32 %v813, %v1088
      %v1402 = vmul.f32 %v814, %v1093
      %v1403 = vmul.f32 %v815, %v1093
      %v1404 = vmul.f32 %v816, %v1098
      %v1405 = vmul.f32 %v817, %v1098
      %v1406 = vmul.f32 %v818, %v1103
      %v1407 = vmul.f32 %v819, %v1103
      %v1408 = vmul.f32 %v820, %v1108
      %v1409 = vmul.f32 %v821, %v1108
      %v1410 = vmul.f32 %v822, %v1113
      %v1411 = vmul.f32 %v823, %v1113
      %v1412 = vmul.f32 %v824, %v1118
      %v1413 = vmul.f32 %v825, %v1118
      %v1414 = vmul.f32 %v826, %v1123
      %v1415 = vmul.f32 %v827, %v1123
      %v1416 = vmul.f32 %v828, %v1128
      %v1417 = vmul.f32 %v829, %v1128
      %v1418 = vmul.f32 %v830, %v1133
      %v1419 = vmul.f32 %v831, %v1133
      %v1420 = vmul.f32 %v832, %v1138
      %v1421 = vmul.f32 %v833, %v1138
      %v1422 = vmul.f32 %v834, %v1143
      %v1423 = vmul.f32 %v835, %v1143
      %v1424 = vmul.f32 %v836, %v1148
      %v1425 = vmul.f32 %v837, %v1148
      %v1426 = vmul.f32 %v838, %v1153
      %v1427 = vmul.f32 %v839, %v1153
      %v1428 = vmul.f32 %v840, %v1158
      %v1429 = vmul.f32 %v841, %v1158
      %v1430 = vmul.f32 %v842, %v1163
      %v1431 = vmul.f32 %v843, %v1163
      %v1432 = vmul.f32 %v844, %v1168
      %v1433 = vmul.f32 %v845, %v1168
      %v1434 = vmul.f32 %v846, %v1173
      %v1435 = vmul.f32 %v847, %v1173
      %v1436 = vmul.f32 %v848, %v1178
      %v1437 = vmul.f32 %v849, %v1178
      %v1438 = vmul.f32 %v850, %v1183
      %v1439 = vmul.f32 %v851, %v1183
      %v1440 = vmul.f32 %v852, %v1188
      %v1441 = vmul.f32 %v853, %v1188
      %v1442 = vmul.f32 %v854, %v1193
      %v1443 = vmul.f32 %v855, %v1193
      %v1444 = vmul.f32 %v856, %v1198
      %v1445 = vmul.f32 %v857, %v1198
      %v1446 = vmul.f32 %v858, %v1203
      %v1447 = vmul.f32 %v859, %v1203
      %v1448 = vmul.f32 %v860, %v1208
      %v1449 = vmul.f32 %v861, %v1208
      %v1450 = vmul.f32 %v862, %v1213
      %v1451 = vmul.f32 %v863, %v1213
      %v1452 = vmul.f32 %v864, %v1218
      %v1453 = vmul.f32 %v865, %v1218
      %v1454 = vmul.f32 %v866, %v1223
      %v1455 = vmul.f32 %v867, %v1223
      %v1456 = vmul.f32 %v868, %v1228
      %v1457 = vmul.f32 %v869, %v1228
      %v1458 = vmul.f32 %v870, %v1233
      %v1459 = vmul.f32 %v871, %v1233
      %v1460 = vmul.f32 %v872, %v1238
      %v1461 = vmul.f32 %v873, %v1238
      %v1462 = vmul.f32 %v874, %v1243
      %v1463 = vmul.f32 %v875, %v1243
      %v1464 = vmul.f32 %v876, %v1248
      %v1465 = vmul.f32 %v877, %v1248
      %v1466 = vmul.f32 %v878, %v1253
      %v1467 = vmul.f32 %v879, %v1253
      %v1468 = vmul.f32 %v880, %v1258
      %v1469 = vmul.f32 %v881, %v1258
      %v1470 = vmul.f32 %v882, %v1263
      %v1471 = vmul.f32 %v883, %v1263
      %v1472 = vmul.f32 %v884, %v1268
      %v1473 = vmul.f32 %v885, %v1268
      %v1474 = vmul.f32 %v886, %v1273
      %v1475 = vmul.f32 %v887, %v1273
      %v1476 = vmul.f32 %v888, %v1278
      %v1477 = vmul.f32 %v889, %v1278
      %v1478 = vmul.f32 %v890, %v1283
      %v1479 = vmul.f32 %v891, %v1283
      %v1480 = vmul.f32 %v892, %v1288
      %v1481 = vmul.f32 %v893, %v1288
      %v1482 = vmul.f32 %v894, %v1293
      %v1483 = vmul.f32 %v895, %v1293
      %v1484 = vmul.f32 %v896, %v1298
      %v1485 = vmul.f32 %v897, %v1298
      %v1486 = vmul.f32 %v898, %v1303
      %v1487 = vmul.f32 %v899, %v1303
      %v1488 = vmul.f32 %v900, %v1308
      %v1489 = vmul.f32 %v901, %v1308
      %v1490 = vmul.f32 %v902, %v1313
      %v1491 = vmul.f32 %v903, %v1313
      %v1492 = vmul.f32 %v904, %v1318
      %v1493 = vmul.f32 %v905, %v1318
      %v1494 = vmul.f32 %v906, %v1323
      %v1495 = vmul.f32 %v907, %v1323
      %v1496 = vmul.f32 %v908, %v1328
      %v1497 = vmul.f32 %v909, %v1328
      %1498 = vst [vmem:[%s150] sm:$0xff] %v1330
      %vm1499 = vcmask 556032
      %1500 = vst.msk [vmem:[%s150 + $0x8] sm:$0xff] %vm1499, %v1331
      %1501 = vst [vmem:[%s150 + $0x10] sm:$0xff] %v1332
      %1502 = vst.msk [vmem:[%s150 + $0x18] sm:$0xff] %vm1499, %v1333
      %1503 = vst [vmem:[%s150 + $0x20] sm:$0xff] %v1334
      %1504 = vst.msk [vmem:[%s150 + $0x28] sm:$0xff] %vm1499, %v1335
      %1505 = vst [vmem:[%s150 + $0x30] sm:$0xff] %v1336
      %1506 = vst.msk [vmem:[%s150 + $0x38] sm:$0xff] %vm1499, %v1337
      %1507 = vst [vmem:[%s150 + $0x40] sm:$0xff] %v1338
      %1508 = vst.msk [vmem:[%s150 + $0x48] sm:$0xff] %vm1499, %v1339
      %1509 = vst [vmem:[%s150 + $0x50] sm:$0xff] %v1340
      %1510 = vst.msk [vmem:[%s150 + $0x58] sm:$0xff] %vm1499, %v1341
      %1511 = vst [vmem:[%s150 + $0x60] sm:$0xff] %v1342
      %1512 = vst.msk [vmem:[%s150 + $0x68] sm:$0xff] %vm1499, %v1343
      %1513 = vst [vmem:[%s150 + $0x70] sm:$0xff] %v1344
      %1514 = vst.msk [vmem:[%s150 + $0x78] sm:$0xff] %vm1499, %v1345
      %1515 = vst [vmem:[%s150 + $0x80] sm:$0xff] %v1346
      %1516 = vst.msk [vmem:[%s150 + $0x88] sm:$0xff] %vm1499, %v1347
      %1517 = vst [vmem:[%s150 + $0x90] sm:$0xff] %v1348
      %1518 = vst.msk [vmem:[%s150 + $0x98] sm:$0xff] %vm1499, %v1349
      %1519 = vst [vmem:[%s150 + $0xa0] sm:$0xff] %v1350
      %1520 = vst.msk [vmem:[%s150 + $0xa8] sm:$0xff] %vm1499, %v1351
      %1521 = vst [vmem:[%s150 + $0xb0] sm:$0xff] %v1352
      %1522 = vst.msk [vmem:[%s150 + $0xb8] sm:$0xff] %vm1499, %v1353
      %1523 = vst [vmem:[%s150 + $0xc0] sm:$0xff] %v1354
      %1524 = vst.msk [vmem:[%s150 + $0xc8] sm:$0xff] %vm1499, %v1355
      %1525 = vst [vmem:[%s150 + $0xd0] sm:$0xff] %v1356
      %1526 = vst.msk [vmem:[%s150 + $0xd8] sm:$0xff] %vm1499, %v1357
      %1527 = vst [vmem:[%s150 + $0xe0] sm:$0xff] %v1358
      %1528 = vst.msk [vmem:[%s150 + $0xe8] sm:$0xff] %vm1499, %v1359
      %1529 = vst [vmem:[%s150 + $0xf0] sm:$0xff] %v1360
      %1530 = vst.msk [vmem:[%s150 + $0xf8] sm:$0xff] %vm1499, %v1361
      %1531 = vst [vmem:[%s150 + $0x100] sm:$0xff] %v1362
      %1532 = vst.msk [vmem:[%s150 + $0x108] sm:$0xff] %vm1499, %v1363
      %1533 = vst [vmem:[%s150 + $0x110] sm:$0xff] %v1364
      %1534 = vst.msk [vmem:[%s150 + $0x118] sm:$0xff] %vm1499, %v1365
      %1535 = vst [vmem:[%s150 + $0x120] sm:$0xff] %v1366
      %1536 = vst.msk [vmem:[%s150 + $0x128] sm:$0xff] %vm1499, %v1367
      %1537 = vst [vmem:[%s150 + $0x130] sm:$0xff] %v1368
      %1538 = vst.msk [vmem:[%s150 + $0x138] sm:$0xff] %vm1499, %v1369
      %1539 = vst [vmem:[%s150 + $0x140] sm:$0xff] %v1370
      %1540 = vst.msk [vmem:[%s150 + $0x148] sm:$0xff] %vm1499, %v1371
      %1541 = vst [vmem:[%s150 + $0x150] sm:$0xff] %v1372
      %1542 = vst.msk [vmem:[%s150 + $0x158] sm:$0xff] %vm1499, %v1373
      %1543 = vst [vmem:[%s150 + $0x160] sm:$0xff] %v1374
      %1544 = vst.msk [vmem:[%s150 + $0x168] sm:$0xff] %vm1499, %v1375
      %1545 = vst [vmem:[%s150 + $0x170] sm:$0xff] %v1376
      %1546 = vst.msk [vmem:[%s150 + $0x178] sm:$0xff] %vm1499, %v1377
      %1547 = vst [vmem:[%s150 + $0x180] sm:$0xff] %v1378
      %1548 = vst.msk [vmem:[%s150 + $0x188] sm:$0xff] %vm1499, %v1379
      %1549 = vst [vmem:[%s150 + $0x190] sm:$0xff] %v1380
      %1550 = vst.msk [vmem:[%s150 + $0x198] sm:$0xff] %vm1499, %v1381
      %1551 = vst [vmem:[%s150 + $0x1a0] sm:$0xff] %v1382
      %1552 = vst.msk [vmem:[%s150 + $0x1a8] sm:$0xff] %vm1499, %v1383
      %1553 = vst [vmem:[%s150 + $0x1b0] sm:$0xff] %v1384
      %1554 = vst.msk [vmem:[%s150 + $0x1b8] sm:$0xff] %vm1499, %v1385
      %1555 = vst [vmem:[%s150 + $0x1c0] sm:$0xff] %v1386
      %1556 = vst.msk [vmem:[%s150 + $0x1c8] sm:$0xff] %vm1499, %v1387
      %1557 = vst [vmem:[%s150 + $0x1d0] sm:$0xff] %v1388
      %1558 = vst.msk [vmem:[%s150 + $0x1d8] sm:$0xff] %vm1499, %v1389
      %1559 = vst [vmem:[%s150 + $0x1e0] sm:$0xff] %v1390
      %1560 = vst.msk [vmem:[%s150 + $0x1e8] sm:$0xff] %vm1499, %v1391
      %1561 = vst [vmem:[%s150 + $0x1f0] sm:$0xff] %v1392
      %1562 = vst.msk [vmem:[%s150 + $0x1f8] sm:$0xff] %vm1499, %v1393
      %1563 = vst [vmem:[%s150 + $0x200] sm:$0xff] %v1394
      %1564 = vst.msk [vmem:[%s150 + $0x208] sm:$0xff] %vm1499, %v1395
      %1565 = vst [vmem:[%s150 + $0x210] sm:$0xff] %v1396
      %1566 = vst.msk [vmem:[%s150 + $0x218] sm:$0xff] %vm1499, %v1397
      %1567 = vst [vmem:[%s150 + $0x220] sm:$0xff] %v1398
      %1568 = vst.msk [vmem:[%s150 + $0x228] sm:$0xff] %vm1499, %v1399
      %1569 = vst [vmem:[%s150 + $0x230] sm:$0xff] %v1400
      %1570 = vst.msk [vmem:[%s150 + $0x238] sm:$0xff] %vm1499, %v1401
      %1571 = vst [vmem:[%s150 + $0x240] sm:$0xff] %v1402
      %1572 = vst.msk [vmem:[%s150 + $0x248] sm:$0xff] %vm1499, %v1403
      %1573 = vst [vmem:[%s150 + $0x250] sm:$0xff] %v1404
      %1574 = vst.msk [vmem:[%s150 + $0x258] sm:$0xff] %vm1499, %v1405
      %1575 = vst [vmem:[%s150 + $0x260] sm:$0xff] %v1406
      %1576 = vst.msk [vmem:[%s150 + $0x268] sm:$0xff] %vm1499, %v1407
      %1577 = vst [vmem:[%s150 + $0x270] sm:$0xff] %v1408
      %1578 = vst.msk [vmem:[%s150 + $0x278] sm:$0xff] %vm1499, %v1409
      %1579 = vst [vmem:[%s150 + $0x280] sm:$0xff] %v1410
      %1580 = vst.msk [vmem:[%s150 + $0x288] sm:$0xff] %vm1499, %v1411
      %1581 = vst [vmem:[%s150 + $0x290] sm:$0xff] %v1412
      %1582 = vst.msk [vmem:[%s150 + $0x298] sm:$0xff] %vm1499, %v1413
      %1583 = vst [vmem:[%s150 + $0x2a0] sm:$0xff] %v1414
      %1584 = vst.msk [vmem:[%s150 + $0x2a8] sm:$0xff] %vm1499, %v1415
      %1585 = vst [vmem:[%s150 + $0x2b0] sm:$0xff] %v1416
      %1586 = vst.msk [vmem:[%s150 + $0x2b8] sm:$0xff] %vm1499, %v1417
      %1587 = vst [vmem:[%s150 + $0x2c0] sm:$0xff] %v1418
      %1588 = vst.msk [vmem:[%s150 + $0x2c8] sm:$0xff] %vm1499, %v1419
      %1589 = vst [vmem:[%s150 + $0x2d0] sm:$0xff] %v1420
      %1590 = vst.msk [vmem:[%s150 + $0x2d8] sm:$0xff] %vm1499, %v1421
      %1591 = vst [vmem:[%s150 + $0x2e0] sm:$0xff] %v1422
      %1592 = vst.msk [vmem:[%s150 + $0x2e8] sm:$0xff] %vm1499, %v1423
      %1593 = vst [vmem:[%s150 + $0x2f0] sm:$0xff] %v1424
      %1594 = vst.msk [vmem:[%s150 + $0x2f8] sm:$0xff] %vm1499, %v1425
      %1595 = vst [vmem:[%s150 + $0x300] sm:$0xff] %v1426
      %1596 = vst.msk [vmem:[%s150 + $0x308] sm:$0xff] %vm1499, %v1427
      %1597 = vst [vmem:[%s150 + $0x310] sm:$0xff] %v1428
      %1598 = vst.msk [vmem:[%s150 + $0x318] sm:$0xff] %vm1499, %v1429
      %1599 = vst [vmem:[%s150 + $0x320] sm:$0xff] %v1430
      %1600 = vst.msk [vmem:[%s150 + $0x328] sm:$0xff] %vm1499, %v1431
      %1601 = vst [vmem:[%s150 + $0x330] sm:$0xff] %v1432
      %1602 = vst.msk [vmem:[%s150 + $0x338] sm:$0xff] %vm1499, %v1433
      %1603 = vst [vmem:[%s150 + $0x340] sm:$0xff] %v1434
      %1604 = vst.msk [vmem:[%s150 + $0x348] sm:$0xff] %vm1499, %v1435
      %1605 = vst [vmem:[%s150 + $0x350] sm:$0xff] %v1436
      %1606 = vst.msk [vmem:[%s150 + $0x358] sm:$0xff] %vm1499, %v1437
      %1607 = vst [vmem:[%s150 + $0x360] sm:$0xff] %v1438
      %1608 = vst.msk [vmem:[%s150 + $0x368] sm:$0xff] %vm1499, %v1439
      %1609 = vst [vmem:[%s150 + $0x370] sm:$0xff] %v1440
      %1610 = vst.msk [vmem:[%s150 + $0x378] sm:$0xff] %vm1499, %v1441
      %1611 = vst [vmem:[%s150 + $0x380] sm:$0xff] %v1442
      %1612 = vst.msk [vmem:[%s150 + $0x388] sm:$0xff] %vm1499, %v1443
      %1613 = vst [vmem:[%s150 + $0x390] sm:$0xff] %v1444
      %1614 = vst.msk [vmem:[%s150 + $0x398] sm:$0xff] %vm1499, %v1445
      %1615 = vst [vmem:[%s150 + $0x3a0] sm:$0xff] %v1446
      %1616 = vst.msk [vmem:[%s150 + $0x3a8] sm:$0xff] %vm1499, %v1447
      %1617 = vst [vmem:[%s150 + $0x3b0] sm:$0xff] %v1448
      %1618 = vst.msk [vmem:[%s150 + $0x3b8] sm:$0xff] %vm1499, %v1449
      %1619 = vst [vmem:[%s150 + $0x3c0] sm:$0xff] %v1450
      %1620 = vst.msk [vmem:[%s150 + $0x3c8] sm:$0xff] %vm1499, %v1451
      %1621 = vst [vmem:[%s150 + $0x3d0] sm:$0xff] %v1452
      %1622 = vst.msk [vmem:[%s150 + $0x3d8] sm:$0xff] %vm1499, %v1453
      %1623 = vst [vmem:[%s150 + $0x3e0] sm:$0xff] %v1454
      %1624 = vst.msk [vmem:[%s150 + $0x3e8] sm:$0xff] %vm1499, %v1455
      %1625 = vst [vmem:[%s150 + $0x3f0] sm:$0xff] %v1456
      %1626 = vst.msk [vmem:[%s150 + $0x3f8] sm:$0xff] %vm1499, %v1457
      %1627 = vst [vmem:[%s150 + $0x400] sm:$0xff] %v1458
      %1628 = vst.msk [vmem:[%s150 + $0x408] sm:$0xff] %vm1499, %v1459
      %1629 = vst [vmem:[%s150 + $0x410] sm:$0xff] %v1460
      %1630 = vst.msk [vmem:[%s150 + $0x418] sm:$0xff] %vm1499, %v1461
      %1631 = vst [vmem:[%s150 + $0x420] sm:$0xff] %v1462
      %1632 = vst.msk [vmem:[%s150 + $0x428] sm:$0xff] %vm1499, %v1463
      %1633 = vst [vmem:[%s150 + $0x430] sm:$0xff] %v1464
      %1634 = vst.msk [vmem:[%s150 + $0x438] sm:$0xff] %vm1499, %v1465
      %1635 = vst [vmem:[%s150 + $0x440] sm:$0xff] %v1466
      %1636 = vst.msk [vmem:[%s150 + $0x448] sm:$0xff] %vm1499, %v1467
      %1637 = vst [vmem:[%s150 + $0x450] sm:$0xff] %v1468
      %1638 = vst.msk [vmem:[%s150 + $0x458] sm:$0xff] %vm1499, %v1469
      %1639 = vst [vmem:[%s150 + $0x460] sm:$0xff] %v1470
      %1640 = vst.msk [vmem:[%s150 + $0x468] sm:$0xff] %vm1499, %v1471
      %1641 = vst [vmem:[%s150 + $0x470] sm:$0xff] %v1472
      %1642 = vst.msk [vmem:[%s150 + $0x478] sm:$0xff] %vm1499, %v1473
      %1643 = vst [vmem:[%s150 + $0x480] sm:$0xff] %v1474
      %1644 = vst.msk [vmem:[%s150 + $0x488] sm:$0xff] %vm1499, %v1475
      %1645 = vst [vmem:[%s150 + $0x490] sm:$0xff] %v1476
      %1646 = vst.msk [vmem:[%s150 + $0x498] sm:$0xff] %vm1499, %v1477
      %1647 = vst [vmem:[%s150 + $0x4a0] sm:$0xff] %v1478
      %1648 = vst.msk [vmem:[%s150 + $0x4a8] sm:$0xff] %vm1499, %v1479
      %1649 = vst [vmem:[%s150 + $0x4b0] sm:$0xff] %v1480
      %1650 = vst.msk [vmem:[%s150 + $0x4b8] sm:$0xff] %vm1499, %v1481
      %1651 = vst [vmem:[%s150 + $0x4c0] sm:$0xff] %v1482
      %1652 = vst.msk [vmem:[%s150 + $0x4c8] sm:$0xff] %vm1499, %v1483
      %1653 = vst [vmem:[%s150 + $0x4d0] sm:$0xff] %v1484
      %1654 = vst.msk [vmem:[%s150 + $0x4d8] sm:$0xff] %vm1499, %v1485
      %1655 = vst [vmem:[%s150 + $0x4e0] sm:$0xff] %v1486
      %1656 = vst.msk [vmem:[%s150 + $0x4e8] sm:$0xff] %vm1499, %v1487
      %1657 = vst [vmem:[%s150 + $0x4f0] sm:$0xff] %v1488
      %1658 = vst.msk [vmem:[%s150 + $0x4f8] sm:$0xff] %vm1499, %v1489
      %1659 = vst [vmem:[%s150 + $0x500] sm:$0xff] %v1490
      %1660 = vst.msk [vmem:[%s150 + $0x508] sm:$0xff] %vm1499, %v1491
      %1661 = vst [vmem:[%s150 + $0x510] sm:$0xff] %v1492
      %1662 = vst.msk [vmem:[%s150 + $0x518] sm:$0xff] %vm1499, %v1493
      %1663 = vst [vmem:[%s150 + $0x520] sm:$0xff] %v1494
      %1664 = vst.msk [vmem:[%s150 + $0x528] sm:$0xff] %vm1499, %v1495
      %1665 = vst [vmem:[%s150 + $0x530] sm:$0xff] %v1496
      %1666 = vst.msk [vmem:[%s150 + $0x538] sm:$0xff] %vm1499, %v1497
      %s1667 = smul.u32 84, %s13
      %p1668 = scmp.lt.s32.totalorder %s1667, 167
      %s1669 = scalar_select %p1668, %s1667, 167
      %s1670 = smul.addr %s1669, 2
      %s1671 = smul.addr %s1670, 8
      %s1672 = scalar_lea.vmem %s2, %s1671
      // Predicated region
      $region29: #{tpu_custom_call.1} parent=27 // pred_check
        %p1673 = pneg %p78
      $region30: #{tpu_custom_call.1} parent=27 // pred_check_branch
        %1675 = sbr.rel (%p1673) target = $region32
      $region31: #{tpu_custom_call.1} parent=27 // pred_region
        %s1676 = smul.u32 84, %s13
      $region32: #{tpu_custom_call.1} parent=27 // pred_fallthru
        _
    $region28: #{tpu_custom_call.1} parent=5 // pred_fallthru
      _
    %p1677 = scmp.le.s32.totalorder 2, %s8
    // Predicated region
    $region33: #{tpu_custom_call.1} parent=5 // pred_check
      %p1678 = pneg %p1677
    $region34: #{tpu_custom_call.1} parent=5 // pred_check_branch
      %1680 = sbr.rel (%p1678) target = $region36
    $region35: #{tpu_custom_call.1} parent=5 // pred_region
      %s1681 = ssub.s32 %s8, 2
      // Predicated region
      $region37: #{tpu_custom_call.1} parent=35 // pred_check
        %p1682 = pneg %p84
      $region38: #{tpu_custom_call.1} parent=35 // pred_check_branch
        %1684 = sbr.rel (%p1682) target = $region40
      $region39: #{tpu_custom_call.1} parent=35 // pred_region
        %s1685 = smul.u32 84, %s14
        %p1686 = scmp.lt.s32.totalorder %s1685, 167
        %s1687 = scalar_select %p1686, %s1685, 167
        %s1688 = smul.addr %s1687, 2
        %s1689 = smul.addr %s1688, 8
        %s1690 = scalar_lea.vmem %s2, %s1689
      $region40: #{tpu_custom_call.1} parent=35 // pred_fallthru
        _
    $region36: #{tpu_custom_call.1} parent=5 // pred_fallthru
      _
  $region6: #{tpu_custom_call.1} parent=0 // loop_footer
    %s12 = sadd.s32 1, %s8
  $region7: #{tpu_custom_call.1} parent=0 // loop_footer_branch
    %7 = sbr.rel target = $region3
  $region8: #{tpu_custom_call.1} parent=0 // loop_exit
    _

</llo_original>
